<compile_context>
chip_gen: v5e
topology: v5e:2x2
jax: 0.10.0
libtpu: 0.0.40
codegen_flags: <defaults>
</compile_context>

<pallas_src>
import math

import jax
import jax.numpy as jnp
from jax.experimental import pallas as pl
from jax.experimental.pallas import tpu as pltpu

# ---------------- config (small, consistent with MPNet) ----------------
B = 2            # batch
S = 8            # seq len
H = 32           # hidden size
NH = 4           # num attention heads
HD = H // NH     # head dim
IM = 64          # intermediate (FFN) size
L = 2            # num hidden layers
NUM_BUCKETS = 32     # relative_attention_num_buckets
MAX_DISTANCE = 128
LN_EPS = 1e-12       # MPNet default layer_norm_eps
BS = B * S

# packed bf16 weight-slab layout (all segment starts 128-lane aligned)
_QKV_OFF, _WI_OFF, _WO2T_OFF, _W_COLS = 0, 128, 256, 384


def _layer_norm(x, gamma, beta, eps):
    mu = jnp.mean(x, axis=-1, keepdims=True)
    var = jnp.mean(jnp.square(x - mu), axis=-1, keepdims=True)
    return (x - mu) * jax.lax.rsqrt(var + eps) * gamma + beta


def _gelu(x):
    # exact (erf) GELU, matching transformers' default "gelu"
    return 0.5 * x * (1.0 + jax.lax.erf(x * 0.7071067811865476))


# ---------------- relative position bias (tiny gather, done in the wrapper) ----
# TODO(synk): bucketization + embedding gather stays in plain JAX; it is a tiny
# integer gather computed once per forward and shared by all layers.
def _relative_position_bucket(relative_position, num_buckets=NUM_BUCKETS,
                              max_distance=MAX_DISTANCE):
    num_buckets = num_buckets // 2
    n = -relative_position
    ret = (n < 0).astype(jnp.int32) * num_buckets
    n = jnp.abs(n)
    max_exact = num_buckets // 2
    is_small = n < max_exact
    val_if_large = max_exact + (
        jnp.log(jnp.maximum(n, 1).astype(jnp.float32) / max_exact)
        / math.log(max_distance / max_exact)
        * (num_buckets - max_exact)
    ).astype(jnp.int32)
    val_if_large = jnp.minimum(val_if_large, num_buckets - 1)
    return ret + jnp.where(is_small, n, val_if_large)


def compute_position_bias(seq_len, rel_bias_table):
    ctx = jnp.arange(seq_len, dtype=jnp.int32)[:, None]
    mem = jnp.arange(seq_len, dtype=jnp.int32)[None, :]
    rp_bucket = _relative_position_bucket(mem - ctx)          # (S, S)
    values = rel_bias_table[rp_bucket]                        # (S, S, NH)
    return jnp.transpose(values, (2, 0, 1))                   # (NH, S, S)


# ---------------- the Pallas kernel ----------------
def mpnet_encoder_kernel(x_ref, bias_ref, w_ref, woh_ref, p_ref, out_ref):
    x = x_ref[...]                             # (BS, H) f32, carried across layers
    bias = bias_ref[...]                       # (NH*B, S, S) f32, head-major
    scale = 1.0 / math.sqrt(HD)

    for l in range(L):                         # static -> fully unrolled
        wl = w_ref[l]                          # (H, 384) bf16: [Wq|Wk|Wv | Wi | Wout^T]
        woh = woh_ref[l]                       # (NH, HD, H) bf16: per-head Wo slices
        p = p_ref[l]                           # (8, 128) f32 packed biases / LN params
        b_qkv = p[0:1, 0:3 * H]
        b_o, g1, be1 = p[1:2, 0:H], p[2:3, 0:H], p[3:4, 0:H]
        b_i = p[4:5, 0:IM]
        b_o2, g2, be2 = p[5:6, 0:H], p[6:7, 0:H], p[7:8, 0:H]

        xb = x.astype(jnp.bfloat16)
        # fused QKV projection: ONE lane-dense MXU pass (N = 3H), f32 accumulation
        qkv = jnp.dot(xb, wl[:, _QKV_OFF:_QKV_OFF + 3 * H],
                      preferred_element_type=jnp.float32) + b_qkv        # (BS, 3H)

        def heads(t):   # (BS, H) columns -> (NH*B, S, HD), head-major then batch
            return jnp.stack([t[b * S:(b + 1) * S, h * HD:(h + 1) * HD]
                              for h in range(NH) for b in range(B)], axis=0)

        q = heads(qkv[:, 0:H]).astype(jnp.bfloat16)
        k = heads(qkv[:, H:2 * H]).astype(jnp.bfloat16)
        v = heads(qkv[:, 2 * H:3 * H]).astype(jnp.bfloat16)

        # per-(head,batch) scores: no cross-batch blocks, bias precombined in wrapper
        s = jnp.einsum("nqd,nkd->nqk", q, k,
                       preferred_element_type=jnp.float32) * scale + bias
        s = s - jnp.max(s, axis=-1, keepdims=True)
        e = jnp.exp(s)
        # EUP reciprocal (free slot) instead of a VALU divide
        probs = e * pl.reciprocal(jnp.sum(e, axis=-1, keepdims=True), approx=True)

        ctx = jnp.einsum("nqk,nkd->nqd", probs.astype(jnp.bfloat16), v,
                         preferred_element_type=jnp.float32)             # (NH*B, S, HD)
        ctx = ctx.reshape(NH, BS, HD)          # (h, b*S+s, d): major-dim regroup only

        # output projection: per-head slices of Wo, head reduction = 3 vector adds
        o = jnp.sum(jnp.einsum("hid,hdk->hik", ctx.astype(jnp.bfloat16), woh,
                               preferred_element_type=jnp.float32), axis=0) + b_o
        attn = _layer_norm(o + x, g1, be1, LN_EPS)

        inter = _gelu(jnp.dot(attn.astype(jnp.bfloat16), wl[:, _WI_OFF:_WI_OFF + IM],
                              preferred_element_type=jnp.float32) + b_i)  # (BS, IM)
        # FFN output weight stored transposed (H, IM): contract last-with-last ("NT")
        y = jnp.einsum("mi,ni->mn", inter.astype(jnp.bfloat16),
                       wl[:, _WO2T_OFF:_WO2T_OFF + IM],
                       preferred_element_type=jnp.float32) + b_o2         # (BS, H)
        x = _layer_norm(y + attn, g2, be2, LN_EPS)

    out_ref[...] = x.astype(out_ref.dtype)


# ---------------- wrapper ----------------
def mpnet_encoder(hidden_states, attention_mask, rel_bias_table, params):
    (wq, bq, wk, bk, wv, bv, wo, bo, ln1_g, ln1_b,
     wi, bi, wo2, bo2, ln2_g, ln2_b) = params

    # --- pack bf16 matmul weights into ONE (L, H, 384) slab (128-aligned segments) ---
    def seg(w):
        return jnp.pad(w.astype(jnp.bfloat16),
                       ((0, 0), (0, 0), (0, 128 - w.shape[-1])))
    wslab = jnp.concatenate([
        seg(jnp.concatenate([wq, wk, wv], axis=-1)),   # [  0: 96)  Wq|Wk|Wv
        seg(wi),                                       # [128:192)  Wi
        seg(jnp.transpose(wo2, (0, 2, 1))),            # [256:320)  Wout^T
    ], axis=-1)                                        # (L, H, 384) bf16

    # attention output projection pre-viewed per head (host-side relayout, free)
    wo_heads = wo.astype(jnp.bfloat16).reshape(L, NH, HD, H)

    # --- pack all f32 biases / LN params into ONE (L, 8, 128) slab ---
    def row(x):
        return jnp.pad(x.astype(jnp.float32),
                       ((0, 0), (0, 0), (0, 128 - x.shape[-1])))
    pslab = jnp.concatenate([
        row(jnp.concatenate([bq, bk, bv], axis=-1)),   # row 0: qkv bias (96)
        row(bo), row(ln1_g), row(ln1_b),               # rows 1-3
        row(bi), row(bo2), row(ln2_g), row(ln2_b),     # rows 4-7
    ], axis=1)                                         # (L, 8, 128) f32

    # --- shared additive attention bias per (head, batch): (NH*B, S, S) ---
    pos_bias = compute_position_bias(S, rel_bias_table)          # (NH, S, S)
    attn_bias = (pos_bias[:, None, :, :]
                 + attention_mask[None, :, 0, None, :]           # key mask per batch
                 ).reshape(NH * B, S, S).astype(jnp.float32)

    x2d = hidden_states.reshape(BS, H)

    vmem = pltpu.MemorySpace.VMEM
    out2d = pl.pallas_call(
        mpnet_encoder_kernel,
        out_shape=jax.ShapeDtypeStruct((BS, H), hidden_states.dtype),
        in_specs=[pl.BlockSpec(memory_space=vmem)] * 5,
        out_specs=pl.BlockSpec(memory_space=vmem),
    )(x2d, attn_bias, wslab, wo_heads, pslab)
    return out2d.reshape(B, S, H)


# ---------------- pure-JAX reference (mirrors the kernel's bf16/f32 mixed
# precision so the comparison isolates the kernel math) ----------------
def mpnet_encoder_ref(hidden_states, attention_mask, rel_bias_table, params):
    (wq, bq, wk, bk, wv, bv, wo, bo, ln1_g, ln1_b,
     wi, bi, wo2, bo2, ln2_g, ln2_b) = params
    pos = compute_position_bias(S, rel_bias_table)                 # (NH, S, S)
    bias = pos[None] + attention_mask[:, None, :, :]               # (B, NH, S, S)
    scale = 1.0 / math.sqrt(HD)
    x = hidden_states.reshape(BS, H)
    for l in range(L):
        xb = x.astype(jnp.bfloat16)
        q = jnp.dot(xb, wq[l], preferred_element_type=jnp.float32) + bq[l]
        k = jnp.dot(xb, wk[l], preferred_element_type=jnp.float32) + bk[l]
        v = jnp.dot(xb, wv[l], preferred_element_type=jnp.float32) + bv[l]

        def split(t):  # (B*S, H) -> (B, NH, S, HD)
            return t.reshape(B, S, NH, HD).transpose(0, 2, 1, 3)

        qh, kh, vh = (split(t).astype(jnp.bfloat16) for t in (q, k, v))
        scores = jnp.einsum("bhqd,bhkd->bhqk", qh, kh,
                            preferred_element_type=jnp.float32) * scale + bias
        probs = jax.nn.softmax(scores, axis=-1)
        ctxh = jnp.einsum("bhqk,bhkd->bhqd", probs.astype(jnp.bfloat16), vh,
                          preferred_element_type=jnp.float32)
        c = ctxh.transpose(0, 2, 1, 3).reshape(BS, H).astype(jnp.bfloat16)
        o = jnp.dot(c, wo[l], preferred_element_type=jnp.float32) + bo[l]
        attn_out = _layer_norm(o + x, ln1_g[l], ln1_b[l], LN_EPS)
        inter = _gelu(jnp.dot(attn_out.astype(jnp.bfloat16), wi[l],
                              preferred_element_type=jnp.float32) + bi[l])
        y = jnp.dot(inter.astype(jnp.bfloat16), wo2[l],
                    preferred_element_type=jnp.float32) + bo2[l]
        x = _layer_norm(y + attn_out, ln2_g[l], ln2_b[l], LN_EPS)
    return x.reshape(B, S, H)


if __name__ == "__main__":
    key = jax.random.PRNGKey(0)
    ks = jax.random.split(key, 20)

    def init(k, shape, scale=0.05, dtype=jnp.float32):
        return (scale * jax.random.normal(k, shape)).astype(dtype)

    bf = jnp.bfloat16  # weight matrices stored bf16 (halves weight DMA bytes)
    params = (
        init(ks[0], (L, H, H), dtype=bf), init(ks[1], (L, 1, H)),     # q
        init(ks[2], (L, H, H), dtype=bf), init(ks[3], (L, 1, H)),     # k
        init(ks[4], (L, H, H), dtype=bf), init(ks[5], (L, 1, H)),     # v
        init(ks[6], (L, H, H), dtype=bf), init(ks[7], (L, 1, H)),     # o
        jnp.ones((L, 1, H), jnp.float32), jnp.zeros((L, 1, H), jnp.float32),  # LN1
        init(ks[8], (L, H, IM), dtype=bf), init(ks[9], (L, 1, IM)),   # intermediate
        init(ks[10], (L, IM, H), dtype=bf), init(ks[11], (L, 1, H)),  # FFN output
        jnp.ones((L, 1, H), jnp.float32), jnp.zeros((L, 1, H), jnp.float32),  # LN2
    )
    rel_bias_table = init(ks[12], (NUM_BUCKETS, NH), scale=0.1)

    hidden_states = jax.random.normal(ks[13], (B, S, H), jnp.float32)
    # additive attention mask: last 2 key positions of batch element 1 masked out
    attention_mask = jnp.zeros((B, 1, S), jnp.float32)
    attention_mask = attention_mask.at[1, 0, S - 2:].set(-1e9)

    out = mpnet_encoder(hidden_states, attention_mask, rel_bias_table, params)
    out = jax.block_until_ready(out)

    ref = mpnet_encoder_ref(hidden_states, attention_mask, rel_bias_table, params)
    assert out.shape == (B, S, H)
    max_err = float(jnp.max(jnp.abs(out - ref)))
    # tolerance covers the approximate (EUP) softmax reciprocal + accumulation order
    assert jnp.allclose(out, ref, atol=2e-2, rtol=2e-2), max_err

    print("KERNEL_OK")
</pallas_src>

<mosaic_0001>
module attributes {stable_mosaic.version = 11 : i64} {
  func.func @mpnet_encoder_kernel(%arg0: memref<16x32xf32, #tpu.memory_space<vmem>>, %arg1: memref<8x8x8xf32, #tpu.memory_space<vmem>>, %arg2: memref<2x32x384xbf16, #tpu.memory_space<vmem>>, %arg3: memref<2x4x8x32xbf16, #tpu.memory_space<vmem>>, %arg4: memref<2x8x128xf32, #tpu.memory_space<vmem>>, %arg5: memref<16x32xf32, #tpu.memory_space<vmem>>) attributes {dimension_semantics = [], scalar_prefetch = 0 : i64, scratch_operands = 0 : i64, tpu.core_type = #tpu.core_type<tc>} {
    %c0 = arith.constant 0 : index
    %c0_0 = arith.constant 0 : index
    %0 = vector.load %arg0[%c0, %c0_0] : memref<16x32xf32, #tpu.memory_space<vmem>>, vector<16x32xf32>
    %c0_1 = arith.constant 0 : index
    %c0_2 = arith.constant 0 : index
    %c0_3 = arith.constant 0 : index
    %1 = vector.load %arg1[%c0_1, %c0_2, %c0_3] : memref<8x8x8xf32, #tpu.memory_space<vmem>>, vector<8x8x8xf32>
    %c0_4 = arith.constant 0 : index
    %c0_5 = arith.constant 0 : index
    %c0_6 = arith.constant 0 : index
    %2 = vector.load %arg2[%c0_4, %c0_5, %c0_6] : memref<2x32x384xbf16, #tpu.memory_space<vmem>>, vector<1x32x384xbf16>
    %3 = vector.shape_cast %2 : vector<1x32x384xbf16> to vector<32x384xbf16>
    %c0_7 = arith.constant 0 : index
    %c0_8 = arith.constant 0 : index
    %c0_9 = arith.constant 0 : index
    %c0_10 = arith.constant 0 : index
    %4 = vector.load %arg3[%c0_7, %c0_8, %c0_9, %c0_10] : memref<2x4x8x32xbf16, #tpu.memory_space<vmem>>, vector<1x4x8x32xbf16>
    %5 = vector.shape_cast %4 : vector<1x4x8x32xbf16> to vector<4x8x32xbf16>
    %c0_11 = arith.constant 0 : index
    %c0_12 = arith.constant 0 : index
    %c0_13 = arith.constant 0 : index
    %6 = vector.load %arg4[%c0_11, %c0_12, %c0_13] : memref<2x8x128xf32, #tpu.memory_space<vmem>>, vector<1x8x128xf32>
    %7 = vector.shape_cast %6 : vector<1x8x128xf32> to vector<8x128xf32>
    %8 = vector.extract_strided_slice %7 {offsets = [0, 0], sizes = [1, 96], strides = [1, 1]} : vector<8x128xf32> to vector<1x96xf32>
    %9 = vector.extract_strided_slice %7 {offsets = [1, 0], sizes = [1, 32], strides = [1, 1]} : vector<8x128xf32> to vector<1x32xf32>
    %10 = vector.extract_strided_slice %7 {offsets = [2, 0], sizes = [1, 32], strides = [1, 1]} : vector<8x128xf32> to vector<1x32xf32>
    %11 = vector.extract_strided_slice %7 {offsets = [3, 0], sizes = [1, 32], strides = [1, 1]} : vector<8x128xf32> to vector<1x32xf32>
    %12 = vector.extract_strided_slice %7 {offsets = [4, 0], sizes = [1, 64], strides = [1, 1]} : vector<8x128xf32> to vector<1x64xf32>
    %13 = vector.extract_strided_slice %7 {offsets = [5, 0], sizes = [1, 32], strides = [1, 1]} : vector<8x128xf32> to vector<1x32xf32>
    %14 = vector.extract_strided_slice %7 {offsets = [6, 0], sizes = [1, 32], strides = [1, 1]} : vector<8x128xf32> to vector<1x32xf32>
    %15 = vector.extract_strided_slice %7 {offsets = [7, 0], sizes = [1, 32], strides = [1, 1]} : vector<8x128xf32> to vector<1x32xf32>
    %16 = arith.truncf %0 : vector<16x32xf32> to vector<16x32xbf16>
    %17 = vector.extract_strided_slice %3 {offsets = [0, 0], sizes = [32, 96], strides = [1, 1]} : vector<32x384xbf16> to vector<32x96xbf16>
    %cst = arith.constant dense<0.000000e+00> : vector<16x96xf32>
    %18 = tpu.matmul %16, %17, %cst {dimension_numbers = #tpu.dot_dimension_numbers<[1], [0], [0], [1], [0, 0, 1, 1], [], []>} : vector<16x32xbf16>, vector<32x96xbf16>, vector<16x96xf32> -> vector<16x96xf32>
    %19 = vector.broadcast %8 : vector<1x96xf32> to vector<16x96xf32>
    %20 = arith.addf %18, %19 : vector<16x96xf32>
    %21 = vector.extract_strided_slice %20 {offsets = [0, 0], sizes = [16, 32], strides = [1, 1]} : vector<16x96xf32> to vector<16x32xf32>
    %22 = vector.extract_strided_slice %21 {offsets = [0, 0], sizes = [8, 8], strides = [1, 1]} : vector<16x32xf32> to vector<8x8xf32>
    %23 = vector.extract_strided_slice %21 {offsets = [8, 0], sizes = [8, 8], strides = [1, 1]} : vector<16x32xf32> to vector<8x8xf32>
    %24 = vector.extract_strided_slice %21 {offsets = [0, 8], sizes = [8, 8], strides = [1, 1]} : vector<16x32xf32> to vector<8x8xf32>
    %25 = vector.extract_strided_slice %21 {offsets = [8, 8], sizes = [8, 8], strides = [1, 1]} : vector<16x32xf32> to vector<8x8xf32>
    %26 = vector.extract_strided_slice %21 {offsets = [0, 16], sizes = [8, 8], strides = [1, 1]} : vector<16x32xf32> to vector<8x8xf32>
    %27 = vector.extract_strided_slice %21 {offsets = [8, 16], sizes = [8, 8], strides = [1, 1]} : vector<16x32xf32> to vector<8x8xf32>
    %28 = vector.extract_strided_slice %21 {offsets = [0, 24], sizes = [8, 8], strides = [1, 1]} : vector<16x32xf32> to vector<8x8xf32>
    %29 = vector.extract_strided_slice %21 {offsets = [8, 24], sizes = [8, 8], strides = [1, 1]} : vector<16x32xf32> to vector<8x8xf32>
    %30 = vector.shape_cast %22 : vector<8x8xf32> to vector<1x8x8xf32>
    %31 = vector.shape_cast %23 : vector<8x8xf32> to vector<1x8x8xf32>
    %32 = vector.shape_cast %24 : vector<8x8xf32> to vector<1x8x8xf32>
    %33 = vector.shape_cast %25 : vector<8x8xf32> to vector<1x8x8xf32>
    %34 = vector.shape_cast %26 : vector<8x8xf32> to vector<1x8x8xf32>
    %35 = vector.shape_cast %27 : vector<8x8xf32> to vector<1x8x8xf32>
    %36 = vector.shape_cast %28 : vector<8x8xf32> to vector<1x8x8xf32>
    %37 = vector.shape_cast %29 : vector<8x8xf32> to vector<1x8x8xf32>
    %38 = tpu.concatenate %30, %31, %32, %33, %34, %35, %36, %37 in 0 : vector<1x8x8xf32>, vector<1x8x8xf32>, vector<1x8x8xf32>, vector<1x8x8xf32>, vector<1x8x8xf32>, vector<1x8x8xf32>, vector<1x8x8xf32>, vector<1x8x8xf32> -> vector<8x8x8xf32>
    %39 = arith.truncf %38 : vector<8x8x8xf32> to vector<8x8x8xbf16>
    %40 = vector.extract_strided_slice %20 {offsets = [0, 32], sizes = [16, 32], strides = [1, 1]} : vector<16x96xf32> to vector<16x32xf32>
    %41 = vector.extract_strided_slice %40 {offsets = [0, 0], sizes = [8, 8], strides = [1, 1]} : vector<16x32xf32> to vector<8x8xf32>
    %42 = vector.extract_strided_slice %40 {offsets = [8, 0], sizes = [8, 8], strides = [1, 1]} : vector<16x32xf32> to vector<8x8xf32>
    %43 = vector.extract_strided_slice %40 {offsets = [0, 8], sizes = [8, 8], strides = [1, 1]} : vector<16x32xf32> to vector<8x8xf32>
    %44 = vector.extract_strided_slice %40 {offsets = [8, 8], sizes = [8, 8], strides = [1, 1]} : vector<16x32xf32> to vector<8x8xf32>
    %45 = vector.extract_strided_slice %40 {offsets = [0, 16], sizes = [8, 8], strides = [1, 1]} : vector<16x32xf32> to vector<8x8xf32>
    %46 = vector.extract_strided_slice %40 {offsets = [8, 16], sizes = [8, 8], strides = [1, 1]} : vector<16x32xf32> to vector<8x8xf32>
    %47 = vector.extract_strided_slice %40 {offsets = [0, 24], sizes = [8, 8], strides = [1, 1]} : vector<16x32xf32> to vector<8x8xf32>
    %48 = vector.extract_strided_slice %40 {offsets = [8, 24], sizes = [8, 8], strides = [1, 1]} : vector<16x32xf32> to vector<8x8xf32>
    %49 = vector.shape_cast %41 : vector<8x8xf32> to vector<1x8x8xf32>
    %50 = vector.shape_cast %42 : vector<8x8xf32> to vector<1x8x8xf32>
    %51 = vector.shape_cast %43 : vector<8x8xf32> to vector<1x8x8xf32>
    %52 = vector.shape_cast %44 : vector<8x8xf32> to vector<1x8x8xf32>
    %53 = vector.shape_cast %45 : vector<8x8xf32> to vector<1x8x8xf32>
    %54 = vector.shape_cast %46 : vector<8x8xf32> to vector<1x8x8xf32>
    %55 = vector.shape_cast %47 : vector<8x8xf32> to vector<1x8x8xf32>
    %56 = vector.shape_cast %48 : vector<8x8xf32> to vector<1x8x8xf32>
    %57 = tpu.concatenate %49, %50, %51, %52, %53, %54, %55, %56 in 0 : vector<1x8x8xf32>, vector<1x8x8xf32>, vector<1x8x8xf32>, vector<1x8x8xf32>, vector<1x8x8xf32>, vector<1x8x8xf32>, vector<1x8x8xf32>, vector<1x8x8xf32> -> vector<8x8x8xf32>
    %58 = arith.truncf %57 : vector<8x8x8xf32> to vector<8x8x8xbf16>
    %59 = vector.extract_strided_slice %20 {offsets = [0, 64], sizes = [16, 32], strides = [1, 1]} : vector<16x96xf32> to vector<16x32xf32>
    %60 = vector.extract_strided_slice %59 {offsets = [0, 0], sizes = [8, 8], strides = [1, 1]} : vector<16x32xf32> to vector<8x8xf32>
    %61 = vector.extract_strided_slice %59 {offsets = [8, 0], sizes = [8, 8], strides = [1, 1]} : vector<16x32xf32> to vector<8x8xf32>
    %62 = vector.extract_strided_slice %59 {offsets = [0, 8], sizes = [8, 8], strides = [1, 1]} : vector<16x32xf32> to vector<8x8xf32>
    %63 = vector.extract_strided_slice %59 {offsets = [8, 8], sizes = [8, 8], strides = [1, 1]} : vector<16x32xf32> to vector<8x8xf32>
    %64 = vector.extract_strided_slice %59 {offsets = [0, 16], sizes = [8, 8], strides = [1, 1]} : vector<16x32xf32> to vector<8x8xf32>
    %65 = vector.extract_strided_slice %59 {offsets = [8, 16], sizes = [8, 8], strides = [1, 1]} : vector<16x32xf32> to vector<8x8xf32>
    %66 = vector.extract_strided_slice %59 {offsets = [0, 24], sizes = [8, 8], strides = [1, 1]} : vector<16x32xf32> to vector<8x8xf32>
    %67 = vector.extract_strided_slice %59 {offsets = [8, 24], sizes = [8, 8], strides = [1, 1]} : vector<16x32xf32> to vector<8x8xf32>
    %68 = vector.shape_cast %60 : vector<8x8xf32> to vector<1x8x8xf32>
    %69 = vector.shape_cast %61 : vector<8x8xf32> to vector<1x8x8xf32>
    %70 = vector.shape_cast %62 : vector<8x8xf32> to vector<1x8x8xf32>
    %71 = vector.shape_cast %63 : vector<8x8xf32> to vector<1x8x8xf32>
    %72 = vector.shape_cast %64 : vector<8x8xf32> to vector<1x8x8xf32>
    %73 = vector.shape_cast %65 : vector<8x8xf32> to vector<1x8x8xf32>
    %74 = vector.shape_cast %66 : vector<8x8xf32> to vector<1x8x8xf32>
    %75 = vector.shape_cast %67 : vector<8x8xf32> to vector<1x8x8xf32>
    %76 = tpu.concatenate %68, %69, %70, %71, %72, %73, %74, %75 in 0 : vector<1x8x8xf32>, vector<1x8x8xf32>, vector<1x8x8xf32>, vector<1x8x8xf32>, vector<1x8x8xf32>, vector<1x8x8xf32>, vector<1x8x8xf32>, vector<1x8x8xf32> -> vector<8x8x8xf32>
    %77 = arith.truncf %76 : vector<8x8x8xf32> to vector<8x8x8xbf16>
    "tpu.trace_start"() <{level = 10 : i32, message = "nqd,nkd->nqk"}> : () -> ()
    %cst_14 = arith.constant dense<0.000000e+00> : vector<8x8x8xf32>
    %78 = tpu.matmul %39, %58, %cst_14 {dimension_numbers = #tpu.dot_dimension_numbers<[2], [2], [1], [1], [0, 0, 0, 1, 1, 1], [0], [0]>} : vector<8x8x8xbf16>, vector<8x8x8xbf16>, vector<8x8x8xf32> -> vector<8x8x8xf32>
    "tpu.trace_stop"() : () -> ()
    %cst_15 = arith.constant 0.353553385 : f32
    %79 = vector.broadcast %cst_15 : f32 to vector<8x8x8xf32>
    %80 = arith.mulf %78, %79 : vector<8x8x8xf32>
    %81 = arith.addf %80, %1 : vector<8x8x8xf32>
    %cst_16 = arith.constant dense<0xFF800000> : vector<8x8xf32>
    %82 = vector.multi_reduction <maximumf>, %81, %cst_16 [2] : vector<8x8x8xf32> to vector<8x8xf32>
    %83 = vector.shape_cast %82 : vector<8x8xf32> to vector<8x8x1xf32>
    %84 = vector.broadcast %83 : vector<8x8x1xf32> to vector<8x8x8xf32>
    %85 = arith.subf %81, %84 : vector<8x8x8xf32>
    %86 = math.exp %85 : vector<8x8x8xf32>
    %cst_17 = arith.constant dense<0.000000e+00> : vector<8x8xf32>
    %87 = vector.multi_reduction <add>, %86, %cst_17 [2] : vector<8x8x8xf32> to vector<8x8xf32>
    %88 = vector.shape_cast %87 : vector<8x8xf32> to vector<8x8x1xf32>
    %89 = tpu.reciprocal %88 {approx = true} : vector<8x8x1xf32> -> vector<8x8x1xf32>
    %90 = vector.broadcast %89 : vector<8x8x1xf32> to vector<8x8x8xf32>
    %91 = arith.mulf %86, %90 : vector<8x8x8xf32>
    %92 = arith.truncf %91 : vector<8x8x8xf32> to vector<8x8x8xbf16>
    "tpu.trace_start"() <{level = 10 : i32, message = "nqk,nkd->nqd"}> : () -> ()
    %cst_18 = arith.constant dense<0.000000e+00> : vector<8x8x8xf32>
    %93 = tpu.matmul %92, %77, %cst_18 {dimension_numbers = #tpu.dot_dimension_numbers<[2], [1], [1], [2], [0, 0, 0, 1, 1, 2], [0], [0]>} : vector<8x8x8xbf16>, vector<8x8x8xbf16>, vector<8x8x8xf32> -> vector<8x8x8xf32>
    "tpu.trace_stop"() : () -> ()
    %94 = vector.shape_cast %93 : vector<8x8x8xf32> to vector<4x16x8xf32>
    %95 = arith.truncf %94 : vector<4x16x8xf32> to vector<4x16x8xbf16>
    "tpu.trace_start"() <{level = 10 : i32, message = "hid,hdk->hik"}> : () -> ()
    %cst_19 = arith.constant dense<0.000000e+00> : vector<4x16x32xf32>
    %96 = tpu.matmul %95, %5, %cst_19 {dimension_numbers = #tpu.dot_dimension_numbers<[2], [1], [1], [2], [0, 0, 0, 1, 1, 2], [0], [0]>} : vector<4x16x8xbf16>, vector<4x8x32xbf16>, vector<4x16x32xf32> -> vector<4x16x32xf32>
    "tpu.trace_stop"() : () -> ()
    %cst_20 = arith.constant dense<0.000000e+00> : vector<16x32xf32>
    %97 = vector.multi_reduction <add>, %96, %cst_20 [0] : vector<4x16x32xf32> to vector<16x32xf32>
    %98 = vector.broadcast %9 : vector<1x32xf32> to vector<16x32xf32>
    %99 = arith.addf %97, %98 : vector<16x32xf32>
    %100 = arith.addf %99, %0 : vector<16x32xf32>
    %cst_21 = arith.constant dense<0.000000e+00> : vector<16xf32>
    %101 = vector.multi_reduction <add>, %100, %cst_21 [1] : vector<16x32xf32> to vector<16xf32>
    %102 = vector.shape_cast %101 : vector<16xf32> to vector<16x1xf32>
    %cst_22 = arith.constant 3.200000e+01 : f32
    %103 = vector.broadcast %cst_22 : f32 to vector<16x1xf32>
    %104 = arith.divf %102, %103 : vector<16x1xf32>
    %105 = vector.broadcast %104 : vector<16x1xf32> to vector<16x32xf32>
    %106 = arith.subf %100, %105 : vector<16x32xf32>
    %107 = arith.mulf %106, %106 : vector<16x32xf32>
    %cst_23 = arith.constant dense<0.000000e+00> : vector<16xf32>
    %108 = vector.multi_reduction <add>, %107, %cst_23 [1] : vector<16x32xf32> to vector<16xf32>
    %109 = vector.shape_cast %108 : vector<16xf32> to vector<16x1xf32>
    %cst_24 = arith.constant 3.200000e+01 : f32
    %110 = vector.broadcast %cst_24 : f32 to vector<16x1xf32>
    %111 = arith.divf %109, %110 : vector<16x1xf32>
    %112 = vector.broadcast %104 : vector<16x1xf32> to vector<16x32xf32>
    %113 = arith.subf %100, %112 : vector<16x32xf32>
    %cst_25 = arith.constant 9.99999996E-13 : f32
    %114 = vector.broadcast %cst_25 : f32 to vector<16x1xf32>
    %115 = arith.addf %111, %114 : vector<16x1xf32>
    %116 = math.rsqrt %115 : vector<16x1xf32>
    %117 = vector.broadcast %116 : vector<16x1xf32> to vector<16x32xf32>
    %118 = arith.mulf %113, %117 : vector<16x32xf32>
    %119 = vector.broadcast %10 : vector<1x32xf32> to vector<16x32xf32>
    %120 = arith.mulf %118, %119 : vector<16x32xf32>
    %121 = vector.broadcast %11 : vector<1x32xf32> to vector<16x32xf32>
    %122 = arith.addf %120, %121 : vector<16x32xf32>
    %123 = arith.truncf %122 : vector<16x32xf32> to vector<16x32xbf16>
    %124 = vector.extract_strided_slice %3 {offsets = [0, 128], sizes = [32, 64], strides = [1, 1]} : vector<32x384xbf16> to vector<32x64xbf16>
    %cst_26 = arith.constant dense<0.000000e+00> : vector<16x64xf32>
    %125 = tpu.matmul %123, %124, %cst_26 {dimension_numbers = #tpu.dot_dimension_numbers<[1], [0], [0], [1], [0, 0, 1, 1], [], []>} : vector<16x32xbf16>, vector<32x64xbf16>, vector<16x64xf32> -> vector<16x64xf32>
    %126 = vector.broadcast %12 : vector<1x64xf32> to vector<16x64xf32>
    %127 = arith.addf %125, %126 : vector<16x64xf32>
    %cst_27 = arith.constant 5.000000e-01 : f32
    %128 = vector.broadcast %cst_27 : f32 to vector<16x64xf32>
    %129 = arith.mulf %128, %127 : vector<16x64xf32>
    %cst_28 = arith.constant 0.707106769 : f32
    %130 = vector.broadcast %cst_28 : f32 to vector<16x64xf32>
    %131 = arith.mulf %127, %130 : vector<16x64xf32>
    %132 = math.erf %131 : vector<16x64xf32>
    %cst_29 = arith.constant 1.000000e+00 : f32
    %133 = vector.broadcast %cst_29 : f32 to vector<16x64xf32>
    %134 = arith.addf %133, %132 : vector<16x64xf32>
    %135 = arith.mulf %129, %134 : vector<16x64xf32>
    %136 = arith.truncf %135 : vector<16x64xf32> to vector<16x64xbf16>
    %137 = vector.extract_strided_slice %3 {offsets = [0, 256], sizes = [32, 64], strides = [1, 1]} : vector<32x384xbf16> to vector<32x64xbf16>
    "tpu.trace_start"() <{level = 10 : i32, message = "mi,ni->mn"}> : () -> ()
    %cst_30 = arith.constant dense<0.000000e+00> : vector<16x32xf32>
    %138 = tpu.matmul %136, %137, %cst_30 {dimension_numbers = #tpu.dot_dimension_numbers<[1], [1], [0], [0], [0, 0, 1, 0], [], []>} : vector<16x64xbf16>, vector<32x64xbf16>, vector<16x32xf32> -> vector<16x32xf32>
    "tpu.trace_stop"() : () -> ()
    %139 = vector.broadcast %13 : vector<1x32xf32> to vector<16x32xf32>
    %140 = arith.addf %138, %139 : vector<16x32xf32>
    %141 = arith.addf %140, %122 : vector<16x32xf32>
    %cst_31 = arith.constant dense<0.000000e+00> : vector<16xf32>
    %142 = vector.multi_reduction <add>, %141, %cst_31 [1] : vector<16x32xf32> to vector<16xf32>
    %143 = vector.shape_cast %142 : vector<16xf32> to vector<16x1xf32>
    %cst_32 = arith.constant 3.200000e+01 : f32
    %144 = vector.broadcast %cst_32 : f32 to vector<16x1xf32>
    %145 = arith.divf %143, %144 : vector<16x1xf32>
    %146 = vector.broadcast %145 : vector<16x1xf32> to vector<16x32xf32>
    %147 = arith.subf %141, %146 : vector<16x32xf32>
    %148 = arith.mulf %147, %147 : vector<16x32xf32>
    %cst_33 = arith.constant dense<0.000000e+00> : vector<16xf32>
    %149 = vector.multi_reduction <add>, %148, %cst_33 [1] : vector<16x32xf32> to vector<16xf32>
    %150 = vector.shape_cast %149 : vector<16xf32> to vector<16x1xf32>
    %cst_34 = arith.constant 3.200000e+01 : f32
    %151 = vector.broadcast %cst_34 : f32 to vector<16x1xf32>
    %152 = arith.divf %150, %151 : vector<16x1xf32>
    %153 = vector.broadcast %145 : vector<16x1xf32> to vector<16x32xf32>
    %154 = arith.subf %141, %153 : vector<16x32xf32>
    %cst_35 = arith.constant 9.99999996E-13 : f32
    %155 = vector.broadcast %cst_35 : f32 to vector<16x1xf32>
    %156 = arith.addf %152, %155 : vector<16x1xf32>
    %157 = math.rsqrt %156 : vector<16x1xf32>
    %158 = vector.broadcast %157 : vector<16x1xf32> to vector<16x32xf32>
    %159 = arith.mulf %154, %158 : vector<16x32xf32>
    %160 = vector.broadcast %14 : vector<1x32xf32> to vector<16x32xf32>
    %161 = arith.mulf %159, %160 : vector<16x32xf32>
    %162 = vector.broadcast %15 : vector<1x32xf32> to vector<16x32xf32>
    %163 = arith.addf %161, %162 : vector<16x32xf32>
    %c1 = arith.constant 1 : index
    %c0_36 = arith.constant 0 : index
    %c0_37 = arith.constant 0 : index
    %164 = vector.load %arg2[%c1, %c0_36, %c0_37] : memref<2x32x384xbf16, #tpu.memory_space<vmem>>, vector<1x32x384xbf16>
    %165 = vector.shape_cast %164 : vector<1x32x384xbf16> to vector<32x384xbf16>
    %c1_38 = arith.constant 1 : index
    %c0_39 = arith.constant 0 : index
    %c0_40 = arith.constant 0 : index
    %c0_41 = arith.constant 0 : index
    %166 = vector.load %arg3[%c1_38, %c0_39, %c0_40, %c0_41] : memref<2x4x8x32xbf16, #tpu.memory_space<vmem>>, vector<1x4x8x32xbf16>
    %167 = vector.shape_cast %166 : vector<1x4x8x32xbf16> to vector<4x8x32xbf16>
    %c1_42 = arith.constant 1 : index
    %c0_43 = arith.constant 0 : index
    %c0_44 = arith.constant 0 : index
    %168 = vector.load %arg4[%c1_42, %c0_43, %c0_44] : memref<2x8x128xf32, #tpu.memory_space<vmem>>, vector<1x8x128xf32>
    %169 = vector.shape_cast %168 : vector<1x8x128xf32> to vector<8x128xf32>
    %170 = vector.extract_strided_slice %169 {offsets = [0, 0], sizes = [1, 96], strides = [1, 1]} : vector<8x128xf32> to vector<1x96xf32>
    %171 = vector.extract_strided_slice %169 {offsets = [1, 0], sizes = [1, 32], strides = [1, 1]} : vector<8x128xf32> to vector<1x32xf32>
    %172 = vector.extract_strided_slice %169 {offsets = [2, 0], sizes = [1, 32], strides = [1, 1]} : vector<8x128xf32> to vector<1x32xf32>
    %173 = vector.extract_strided_slice %169 {offsets = [3, 0], sizes = [1, 32], strides = [1, 1]} : vector<8x128xf32> to vector<1x32xf32>
    %174 = vector.extract_strided_slice %169 {offsets = [4, 0], sizes = [1, 64], strides = [1, 1]} : vector<8x128xf32> to vector<1x64xf32>
    %175 = vector.extract_strided_slice %169 {offsets = [5, 0], sizes = [1, 32], strides = [1, 1]} : vector<8x128xf32> to vector<1x32xf32>
    %176 = vector.extract_strided_slice %169 {offsets = [6, 0], sizes = [1, 32], strides = [1, 1]} : vector<8x128xf32> to vector<1x32xf32>
    %177 = vector.extract_strided_slice %169 {offsets = [7, 0], sizes = [1, 32], strides = [1, 1]} : vector<8x128xf32> to vector<1x32xf32>
    %178 = arith.truncf %163 : vector<16x32xf32> to vector<16x32xbf16>
    %179 = vector.extract_strided_slice %165 {offsets = [0, 0], sizes = [32, 96], strides = [1, 1]} : vector<32x384xbf16> to vector<32x96xbf16>
    %cst_45 = arith.constant dense<0.000000e+00> : vector<16x96xf32>
    %180 = tpu.matmul %178, %179, %cst_45 {dimension_numbers = #tpu.dot_dimension_numbers<[1], [0], [0], [1], [0, 0, 1, 1], [], []>} : vector<16x32xbf16>, vector<32x96xbf16>, vector<16x96xf32> -> vector<16x96xf32>
    %181 = vector.broadcast %170 : vector<1x96xf32> to vector<16x96xf32>
    %182 = arith.addf %180, %181 : vector<16x96xf32>
    %183 = vector.extract_strided_slice %182 {offsets = [0, 0], sizes = [16, 32], strides = [1, 1]} : vector<16x96xf32> to vector<16x32xf32>
    %184 = vector.extract_strided_slice %183 {offsets = [0, 0], sizes = [8, 8], strides = [1, 1]} : vector<16x32xf32> to vector<8x8xf32>
    %185 = vector.extract_strided_slice %183 {offsets = [8, 0], sizes = [8, 8], strides = [1, 1]} : vector<16x32xf32> to vector<8x8xf32>
    %186 = vector.extract_strided_slice %183 {offsets = [0, 8], sizes = [8, 8], strides = [1, 1]} : vector<16x32xf32> to vector<8x8xf32>
    %187 = vector.extract_strided_slice %183 {offsets = [8, 8], sizes = [8, 8], strides = [1, 1]} : vector<16x32xf32> to vector<8x8xf32>
    %188 = vector.extract_strided_slice %183 {offsets = [0, 16], sizes = [8, 8], strides = [1, 1]} : vector<16x32xf32> to vector<8x8xf32>
    %189 = vector.extract_strided_slice %183 {offsets = [8, 16], sizes = [8, 8], strides = [1, 1]} : vector<16x32xf32> to vector<8x8xf32>
    %190 = vector.extract_strided_slice %183 {offsets = [0, 24], sizes = [8, 8], strides = [1, 1]} : vector<16x32xf32> to vector<8x8xf32>
    %191 = vector.extract_strided_slice %183 {offsets = [8, 24], sizes = [8, 8], strides = [1, 1]} : vector<16x32xf32> to vector<8x8xf32>
    %192 = vector.shape_cast %184 : vector<8x8xf32> to vector<1x8x8xf32>
    %193 = vector.shape_cast %185 : vector<8x8xf32> to vector<1x8x8xf32>
    %194 = vector.shape_cast %186 : vector<8x8xf32> to vector<1x8x8xf32>
    %195 = vector.shape_cast %187 : vector<8x8xf32> to vector<1x8x8xf32>
    %196 = vector.shape_cast %188 : vector<8x8xf32> to vector<1x8x8xf32>
    %197 = vector.shape_cast %189 : vector<8x8xf32> to vector<1x8x8xf32>
    %198 = vector.shape_cast %190 : vector<8x8xf32> to vector<1x8x8xf32>
    %199 = vector.shape_cast %191 : vector<8x8xf32> to vector<1x8x8xf32>
    %200 = tpu.concatenate %192, %193, %194, %195, %196, %197, %198, %199 in 0 : vector<1x8x8xf32>, vector<1x8x8xf32>, vector<1x8x8xf32>, vector<1x8x8xf32>, vector<1x8x8xf32>, vector<1x8x8xf32>, vector<1x8x8xf32>, vector<1x8x8xf32> -> vector<8x8x8xf32>
    %201 = arith.truncf %200 : vector<8x8x8xf32> to vector<8x8x8xbf16>
    %202 = vector.extract_strided_slice %182 {offsets = [0, 32], sizes = [16, 32], strides = [1, 1]} : vector<16x96xf32> to vector<16x32xf32>
    %203 = vector.extract_strided_slice %202 {offsets = [0, 0], sizes = [8, 8], strides = [1, 1]} : vector<16x32xf32> to vector<8x8xf32>
    %204 = vector.extract_strided_slice %202 {offsets = [8, 0], sizes = [8, 8], strides = [1, 1]} : vector<16x32xf32> to vector<8x8xf32>
    %205 = vector.extract_strided_slice %202 {offsets = [0, 8], sizes = [8, 8], strides = [1, 1]} : vector<16x32xf32> to vector<8x8xf32>
    %206 = vector.extract_strided_slice %202 {offsets = [8, 8], sizes = [8, 8], strides = [1, 1]} : vector<16x32xf32> to vector<8x8xf32>
    %207 = vector.extract_strided_slice %202 {offsets = [0, 16], sizes = [8, 8], strides = [1, 1]} : vector<16x32xf32> to vector<8x8xf32>
    %208 = vector.extract_strided_slice %202 {offsets = [8, 16], sizes = [8, 8], strides = [1, 1]} : vector<16x32xf32> to vector<8x8xf32>
    %209 = vector.extract_strided_slice %202 {offsets = [0, 24], sizes = [8, 8], strides = [1, 1]} : vector<16x32xf32> to vector<8x8xf32>
    %210 = vector.extract_strided_slice %202 {offsets = [8, 24], sizes = [8, 8], strides = [1, 1]} : vector<16x32xf32> to vector<8x8xf32>
    %211 = vector.shape_cast %203 : vector<8x8xf32> to vector<1x8x8xf32>
    %212 = vector.shape_cast %204 : vector<8x8xf32> to vector<1x8x8xf32>
    %213 = vector.shape_cast %205 : vector<8x8xf32> to vector<1x8x8xf32>
    %214 = vector.shape_cast %206 : vector<8x8xf32> to vector<1x8x8xf32>
    %215 = vector.shape_cast %207 : vector<8x8xf32> to vector<1x8x8xf32>
    %216 = vector.shape_cast %208 : vector<8x8xf32> to vector<1x8x8xf32>
    %217 = vector.shape_cast %209 : vector<8x8xf32> to vector<1x8x8xf32>
    %218 = vector.shape_cast %210 : vector<8x8xf32> to vector<1x8x8xf32>
    %219 = tpu.concatenate %211, %212, %213, %214, %215, %216, %217, %218 in 0 : vector<1x8x8xf32>, vector<1x8x8xf32>, vector<1x8x8xf32>, vector<1x8x8xf32>, vector<1x8x8xf32>, vector<1x8x8xf32>, vector<1x8x8xf32>, vector<1x8x8xf32> -> vector<8x8x8xf32>
    %220 = arith.truncf %219 : vector<8x8x8xf32> to vector<8x8x8xbf16>
    %221 = vector.extract_strided_slice %182 {offsets = [0, 64], sizes = [16, 32], strides = [1, 1]} : vector<16x96xf32> to vector<16x32xf32>
    %222 = vector.extract_strided_slice %221 {offsets = [0, 0], sizes = [8, 8], strides = [1, 1]} : vector<16x32xf32> to vector<8x8xf32>
    %223 = vector.extract_strided_slice %221 {offsets = [8, 0], sizes = [8, 8], strides = [1, 1]} : vector<16x32xf32> to vector<8x8xf32>
    %224 = vector.extract_strided_slice %221 {offsets = [0, 8], sizes = [8, 8], strides = [1, 1]} : vector<16x32xf32> to vector<8x8xf32>
    %225 = vector.extract_strided_slice %221 {offsets = [8, 8], sizes = [8, 8], strides = [1, 1]} : vector<16x32xf32> to vector<8x8xf32>
    %226 = vector.extract_strided_slice %221 {offsets = [0, 16], sizes = [8, 8], strides = [1, 1]} : vector<16x32xf32> to vector<8x8xf32>
    %227 = vector.extract_strided_slice %221 {offsets = [8, 16], sizes = [8, 8], strides = [1, 1]} : vector<16x32xf32> to vector<8x8xf32>
    %228 = vector.extract_strided_slice %221 {offsets = [0, 24], sizes = [8, 8], strides = [1, 1]} : vector<16x32xf32> to vector<8x8xf32>
    %229 = vector.extract_strided_slice %221 {offsets = [8, 24], sizes = [8, 8], strides = [1, 1]} : vector<16x32xf32> to vector<8x8xf32>
    %230 = vector.shape_cast %222 : vector<8x8xf32> to vector<1x8x8xf32>
    %231 = vector.shape_cast %223 : vector<8x8xf32> to vector<1x8x8xf32>
    %232 = vector.shape_cast %224 : vector<8x8xf32> to vector<1x8x8xf32>
    %233 = vector.shape_cast %225 : vector<8x8xf32> to vector<1x8x8xf32>
    %234 = vector.shape_cast %226 : vector<8x8xf32> to vector<1x8x8xf32>
    %235 = vector.shape_cast %227 : vector<8x8xf32> to vector<1x8x8xf32>
    %236 = vector.shape_cast %228 : vector<8x8xf32> to vector<1x8x8xf32>
    %237 = vector.shape_cast %229 : vector<8x8xf32> to vector<1x8x8xf32>
    %238 = tpu.concatenate %230, %231, %232, %233, %234, %235, %236, %237 in 0 : vector<1x8x8xf32>, vector<1x8x8xf32>, vector<1x8x8xf32>, vector<1x8x8xf32>, vector<1x8x8xf32>, vector<1x8x8xf32>, vector<1x8x8xf32>, vector<1x8x8xf32> -> vector<8x8x8xf32>
    %239 = arith.truncf %238 : vector<8x8x8xf32> to vector<8x8x8xbf16>
    "tpu.trace_start"() <{level = 10 : i32, message = "nqd,nkd->nqk"}> : () -> ()
    %cst_46 = arith.constant dense<0.000000e+00> : vector<8x8x8xf32>
    %240 = tpu.matmul %201, %220, %cst_46 {dimension_numbers = #tpu.dot_dimension_numbers<[2], [2], [1], [1], [0, 0, 0, 1, 1, 1], [0], [0]>} : vector<8x8x8xbf16>, vector<8x8x8xbf16>, vector<8x8x8xf32> -> vector<8x8x8xf32>
    "tpu.trace_stop"() : () -> ()
    %cst_47 = arith.constant 0.353553385 : f32
    %241 = vector.broadcast %cst_47 : f32 to vector<8x8x8xf32>
    %242 = arith.mulf %240, %241 : vector<8x8x8xf32>
    %243 = arith.addf %242, %1 : vector<8x8x8xf32>
    %cst_48 = arith.constant dense<0xFF800000> : vector<8x8xf32>
    %244 = vector.multi_reduction <maximumf>, %243, %cst_48 [2] : vector<8x8x8xf32> to vector<8x8xf32>
    %245 = vector.shape_cast %244 : vector<8x8xf32> to vector<8x8x1xf32>
    %246 = vector.broadcast %245 : vector<8x8x1xf32> to vector<8x8x8xf32>
    %247 = arith.subf %243, %246 : vector<8x8x8xf32>
    %248 = math.exp %247 : vector<8x8x8xf32>
    %cst_49 = arith.constant dense<0.000000e+00> : vector<8x8xf32>
    %249 = vector.multi_reduction <add>, %248, %cst_49 [2] : vector<8x8x8xf32> to vector<8x8xf32>
    %250 = vector.shape_cast %249 : vector<8x8xf32> to vector<8x8x1xf32>
    %251 = tpu.reciprocal %250 {approx = true} : vector<8x8x1xf32> -> vector<8x8x1xf32>
    %252 = vector.broadcast %251 : vector<8x8x1xf32> to vector<8x8x8xf32>
    %253 = arith.mulf %248, %252 : vector<8x8x8xf32>
    %254 = arith.truncf %253 : vector<8x8x8xf32> to vector<8x8x8xbf16>
    "tpu.trace_start"() <{level = 10 : i32, message = "nqk,nkd->nqd"}> : () -> ()
    %cst_50 = arith.constant dense<0.000000e+00> : vector<8x8x8xf32>
    %255 = tpu.matmul %254, %239, %cst_50 {dimension_numbers = #tpu.dot_dimension_numbers<[2], [1], [1], [2], [0, 0, 0, 1, 1, 2], [0], [0]>} : vector<8x8x8xbf16>, vector<8x8x8xbf16>, vector<8x8x8xf32> -> vector<8x8x8xf32>
    "tpu.trace_stop"() : () -> ()
    %256 = vector.shape_cast %255 : vector<8x8x8xf32> to vector<4x16x8xf32>
    %257 = arith.truncf %256 : vector<4x16x8xf32> to vector<4x16x8xbf16>
    "tpu.trace_start"() <{level = 10 : i32, message = "hid,hdk->hik"}> : () -> ()
    %cst_51 = arith.constant dense<0.000000e+00> : vector<4x16x32xf32>
    %258 = tpu.matmul %257, %167, %cst_51 {dimension_numbers = #tpu.dot_dimension_numbers<[2], [1], [1], [2], [0, 0, 0, 1, 1, 2], [0], [0]>} : vector<4x16x8xbf16>, vector<4x8x32xbf16>, vector<4x16x32xf32> -> vector<4x16x32xf32>
    "tpu.trace_stop"() : () -> ()
    %cst_52 = arith.constant dense<0.000000e+00> : vector<16x32xf32>
    %259 = vector.multi_reduction <add>, %258, %cst_52 [0] : vector<4x16x32xf32> to vector<16x32xf32>
    %260 = vector.broadcast %171 : vector<1x32xf32> to vector<16x32xf32>
    %261 = arith.addf %259, %260 : vector<16x32xf32>
    %262 = arith.addf %261, %163 : vector<16x32xf32>
    %cst_53 = arith.constant dense<0.000000e+00> : vector<16xf32>
    %263 = vector.multi_reduction <add>, %262, %cst_53 [1] : vector<16x32xf32> to vector<16xf32>
    %264 = vector.shape_cast %263 : vector<16xf32> to vector<16x1xf32>
    %cst_54 = arith.constant 3.200000e+01 : f32
    %265 = vector.broadcast %cst_54 : f32 to vector<16x1xf32>
    %266 = arith.divf %264, %265 : vector<16x1xf32>
    %267 = vector.broadcast %266 : vector<16x1xf32> to vector<16x32xf32>
    %268 = arith.subf %262, %267 : vector<16x32xf32>
    %269 = arith.mulf %268, %268 : vector<16x32xf32>
    %cst_55 = arith.constant dense<0.000000e+00> : vector<16xf32>
    %270 = vector.multi_reduction <add>, %269, %cst_55 [1] : vector<16x32xf32> to vector<16xf32>
    %271 = vector.shape_cast %270 : vector<16xf32> to vector<16x1xf32>
    %cst_56 = arith.constant 3.200000e+01 : f32
    %272 = vector.broadcast %cst_56 : f32 to vector<16x1xf32>
    %273 = arith.divf %271, %272 : vector<16x1xf32>
    %274 = vector.broadcast %266 : vector<16x1xf32> to vector<16x32xf32>
    %275 = arith.subf %262, %274 : vector<16x32xf32>
    %cst_57 = arith.constant 9.99999996E-13 : f32
    %276 = vector.broadcast %cst_57 : f32 to vector<16x1xf32>
    %277 = arith.addf %273, %276 : vector<16x1xf32>
    %278 = math.rsqrt %277 : vector<16x1xf32>
    %279 = vector.broadcast %278 : vector<16x1xf32> to vector<16x32xf32>
    %280 = arith.mulf %275, %279 : vector<16x32xf32>
    %281 = vector.broadcast %172 : vector<1x32xf32> to vector<16x32xf32>
    %282 = arith.mulf %280, %281 : vector<16x32xf32>
    %283 = vector.broadcast %173 : vector<1x32xf32> to vector<16x32xf32>
    %284 = arith.addf %282, %283 : vector<16x32xf32>
    %285 = arith.truncf %284 : vector<16x32xf32> to vector<16x32xbf16>
    %286 = vector.extract_strided_slice %165 {offsets = [0, 128], sizes = [32, 64], strides = [1, 1]} : vector<32x384xbf16> to vector<32x64xbf16>
    %cst_58 = arith.constant dense<0.000000e+00> : vector<16x64xf32>
    %287 = tpu.matmul %285, %286, %cst_58 {dimension_numbers = #tpu.dot_dimension_numbers<[1], [0], [0], [1], [0, 0, 1, 1], [], []>} : vector<16x32xbf16>, vector<32x64xbf16>, vector<16x64xf32> -> vector<16x64xf32>
    %288 = vector.broadcast %174 : vector<1x64xf32> to vector<16x64xf32>
    %289 = arith.addf %287, %288 : vector<16x64xf32>
    %cst_59 = arith.constant 5.000000e-01 : f32
    %290 = vector.broadcast %cst_59 : f32 to vector<16x64xf32>
    %291 = arith.mulf %290, %289 : vector<16x64xf32>
    %cst_60 = arith.constant 0.707106769 : f32
    %292 = vector.broadcast %cst_60 : f32 to vector<16x64xf32>
    %293 = arith.mulf %289, %292 : vector<16x64xf32>
    %294 = math.erf %293 : vector<16x64xf32>
    %cst_61 = arith.constant 1.000000e+00 : f32
    %295 = vector.broadcast %cst_61 : f32 to vector<16x64xf32>
    %296 = arith.addf %295, %294 : vector<16x64xf32>
    %297 = arith.mulf %291, %296 : vector<16x64xf32>
    %298 = arith.truncf %297 : vector<16x64xf32> to vector<16x64xbf16>
    %299 = vector.extract_strided_slice %165 {offsets = [0, 256], sizes = [32, 64], strides = [1, 1]} : vector<32x384xbf16> to vector<32x64xbf16>
    "tpu.trace_start"() <{level = 10 : i32, message = "mi,ni->mn"}> : () -> ()
    %cst_62 = arith.constant dense<0.000000e+00> : vector<16x32xf32>
    %300 = tpu.matmul %298, %299, %cst_62 {dimension_numbers = #tpu.dot_dimension_numbers<[1], [1], [0], [0], [0, 0, 1, 0], [], []>} : vector<16x64xbf16>, vector<32x64xbf16>, vector<16x32xf32> -> vector<16x32xf32>
    "tpu.trace_stop"() : () -> ()
    %301 = vector.broadcast %175 : vector<1x32xf32> to vector<16x32xf32>
    %302 = arith.addf %300, %301 : vector<16x32xf32>
    %303 = arith.addf %302, %284 : vector<16x32xf32>
    %cst_63 = arith.constant dense<0.000000e+00> : vector<16xf32>
    %304 = vector.multi_reduction <add>, %303, %cst_63 [1] : vector<16x32xf32> to vector<16xf32>
    %305 = vector.shape_cast %304 : vector<16xf32> to vector<16x1xf32>
    %cst_64 = arith.constant 3.200000e+01 : f32
    %306 = vector.broadcast %cst_64 : f32 to vector<16x1xf32>
    %307 = arith.divf %305, %306 : vector<16x1xf32>
    %308 = vector.broadcast %307 : vector<16x1xf32> to vector<16x32xf32>
    %309 = arith.subf %303, %308 : vector<16x32xf32>
    %310 = arith.mulf %309, %309 : vector<16x32xf32>
    %cst_65 = arith.constant dense<0.000000e+00> : vector<16xf32>
    %311 = vector.multi_reduction <add>, %310, %cst_65 [1] : vector<16x32xf32> to vector<16xf32>
    %312 = vector.shape_cast %311 : vector<16xf32> to vector<16x1xf32>
    %cst_66 = arith.constant 3.200000e+01 : f32
    %313 = vector.broadcast %cst_66 : f32 to vector<16x1xf32>
    %314 = arith.divf %312, %313 : vector<16x1xf32>
    %315 = vector.broadcast %307 : vector<16x1xf32> to vector<16x32xf32>
    %316 = arith.subf %303, %315 : vector<16x32xf32>
    %cst_67 = arith.constant 9.99999996E-13 : f32
    %317 = vector.broadcast %cst_67 : f32 to vector<16x1xf32>
    %318 = arith.addf %314, %317 : vector<16x1xf32>
    %319 = math.rsqrt %318 : vector<16x1xf32>
    %320 = vector.broadcast %319 : vector<16x1xf32> to vector<16x32xf32>
    %321 = arith.mulf %316, %320 : vector<16x32xf32>
    %322 = vector.broadcast %176 : vector<1x32xf32> to vector<16x32xf32>
    %323 = arith.mulf %321, %322 : vector<16x32xf32>
    %324 = vector.broadcast %177 : vector<1x32xf32> to vector<16x32xf32>
    %325 = arith.addf %323, %324 : vector<16x32xf32>
    %c0_68 = arith.constant 0 : index
    %c0_69 = arith.constant 0 : index
    %326 = vector.load %arg5[%c0_68, %c0_69] : memref<16x32xf32, #tpu.memory_space<vmem>>, vector<16x32xf32>
    tpu.vector_store %arg5[%c0_68, %c0_69], %325 {strides = array<i32>} : memref<16x32xf32, #tpu.memory_space<vmem>>, vector<16x32xf32>,
    return
  }
}

</mosaic_0001>

<llo_original>
// kernel: tpu_custom_call.1
$region0: #{tpu_custom_call.1}
  #allocation0 [shape = 'u32[]', space=smem, size = 0x4, offset = 0x4, fixed_abs, tag = 'smem constant byte address 0x4 - core index']
  #allocation1 [shape = 'u32[72,128]{1,0:T(1,128)}', space=vmem, size = 0x9000, scoped, tag = 'internal scratch']
  %s0 = inlined_call_operand.hbm [shape: f32[16,32], index: 0, kind: input, shape index: {}]
  %s1 = inlined_call_operand.hbm [shape: f32[8,8,8], index: 1, kind: input, shape index: {}]
  %s2 = inlined_call_operand.hbm [shape: bf16[2,32,384], index: 2, kind: input, shape index: {}]
  %s3 = inlined_call_operand.hbm [shape: bf16[2,4,8,32], index: 3, kind: input, shape index: {}]
  %s4 = inlined_call_operand.hbm [shape: f32[2,8,128], index: 4, kind: input, shape index: {}]
  %s5 = inlined_call_operand.hbm [shape: f32[16,32], index: 5, kind: output, shape index: {}]
  %s6 = sld [smem:[#allocation0]]
  $region50: #{tpu_custom_call.1} parent=0
    _
  %s8 = ssub.s32 1, %s6
  %s9 = scalar_select 0, %s8, %s6
  $region1: #{tpu_custom_call.1} parent=0
    #allocation2 [shape = 'u8[8192]{0}', space=vmem, size = 0x2000, scoped, tag = 'input window, operand 0, single buffered']
    #allocation3 [shape = 's32[1]{0}', space=sflag, size = 0x4, scoped, tag = 'scoped memory for tpu_custom_call.1']
    #allocation4 [shape = 's32[1]{0}', space=sflag, size = 0x4, scoped, tag = 'scoped memory for tpu_custom_call.1']
    #allocation5 [shape = 'u8[32768]{0}', space=vmem, size = 0x8000, scoped, tag = 'input window, operand 1, single buffered']
    #allocation6 [shape = 's32[1]{0}', space=sflag, size = 0x4, scoped, tag = 'scoped memory for tpu_custom_call.1']
    #allocation7 [shape = 'u8[49152]{0}', space=vmem, size = 0xc000, scoped, tag = 'input window, operand 2, single buffered']
    #allocation8 [shape = 'u8[16384]{0}', space=vmem, size = 0x4000, scoped, tag = 'input window, operand 3, single buffered']
    #allocation9 [shape = 's32[1]{0}', space=sflag, size = 0x4, scoped, tag = 'scoped memory for tpu_custom_call.1']
    #allocation10 [shape = 'u8[8192]{0}', space=vmem, size = 0x2000, scoped, tag = 'input window, operand 4, single buffered']
    #allocation11 [shape = 'u8[8192]{0}', space=vmem, size = 0x2000, scoped, tag = 'output window, operand 0, single buffered']
    %10 = vsyncpa [#allocation3], 0
    %11 = vsyncpa [#allocation6], 0
    %12 = vsyncpa [#allocation9], 0
    %13 = vsyncpa [#allocation4], 0
    // Predicated region
    $region2: #{tpu_custom_call.1} parent=1 // pred_check
      _
    $region3: #{tpu_custom_call.1} parent=1 // pred_check_branch
      %15 = sbr.rel (0) target = $region5
    $region4: #{tpu_custom_call.1} parent=1 // pred_region
      %17 = vsyncadd [#allocation3], 0
      %s18 = sshll.u32 %s0, 4
      %s19 = int_to_ptr.hbm [resolvable:$true] %s18
      %s20 = sshll.u32 [#allocation2], 4
      %s21 = int_to_ptr.vmem [resolvable:$true] %s20
      %26 = dma.hbm_to_vmem [thread:$0]  %s19, 256, %s21, [#allocation3], 128, 128, 8
    $region5: #{tpu_custom_call.1} parent=1 // pred_fallthru
      _
    // Predicated region
    $region6: #{tpu_custom_call.1} parent=1 // pred_check
      _
    $region7: #{tpu_custom_call.1} parent=1 // pred_check_branch
      %28 = sbr.rel (0) target = $region9
    $region8: #{tpu_custom_call.1} parent=1 // pred_region
      %30 = vsyncadd [#allocation6], 0
      %s31 = sshll.u32 %s1, 4
      %s32 = int_to_ptr.hbm [resolvable:$true] %s31
      %s33 = sshll.u32 [#allocation5], 4
      %s34 = int_to_ptr.vmem [resolvable:$true] %s33
      %39 = dma.hbm_to_vmem [thread:$0]  %s32, 1024, %s34, [#allocation6], 128, 128, 8
    $region9: #{tpu_custom_call.1} parent=1 // pred_fallthru
      _
    // Predicated region
    $region10: #{tpu_custom_call.1} parent=1 // pred_check
      _
    $region11: #{tpu_custom_call.1} parent=1 // pred_check_branch
      %41 = sbr.rel (0) target = $region13
    $region12: #{tpu_custom_call.1} parent=1 // pred_region
      %43 = vsyncadd [#allocation6], 0
      %s44 = sshll.u32 %s2, 4
      %s45 = int_to_ptr.hbm [resolvable:$true] %s44
      %s46 = sshll.u32 [#allocation7], 4
      %s47 = int_to_ptr.vmem [resolvable:$true] %s46
      %52 = dma.hbm_to_vmem [thread:$0]  %s45, 1536, %s47, [#allocation6], 192, 192, 12
    $region13: #{tpu_custom_call.1} parent=1 // pred_fallthru
      _
    // Predicated region
    $region14: #{tpu_custom_call.1} parent=1 // pred_check
      _
    $region15: #{tpu_custom_call.1} parent=1 // pred_check_branch
      %54 = sbr.rel (0) target = $region17
    $region16: #{tpu_custom_call.1} parent=1 // pred_region
      %56 = vsyncadd [#allocation9], 0
      %s57 = sshll.u32 %s3, 4
      %s58 = int_to_ptr.hbm [resolvable:$true] %s57
      %s59 = sshll.u32 [#allocation8], 4
      %s60 = int_to_ptr.vmem [resolvable:$true] %s59
      %65 = dma.hbm_to_vmem [thread:$0]  %s58, 512, %s60, [#allocation9], 64, 64, 4
    $region17: #{tpu_custom_call.1} parent=1 // pred_fallthru
      _
    // Predicated region
    $region18: #{tpu_custom_call.1} parent=1 // pred_check
      _
    $region19: #{tpu_custom_call.1} parent=1 // pred_check_branch
      %67 = sbr.rel (0) target = $region21
    $region20: #{tpu_custom_call.1} parent=1 // pred_region
      %69 = vsyncadd [#allocation9], 0
      %s70 = sshll.u32 %s4, 4
      %s71 = int_to_ptr.hbm [resolvable:$true] %s70
      %s72 = sshll.u32 [#allocation10], 4
      %s73 = int_to_ptr.vmem [resolvable:$true] %s72
      %78 = dma.hbm_to_vmem [thread:$0]  %s71, 256, %s73, [#allocation9], 128, 128, 8
    $region21: #{tpu_custom_call.1} parent=1 // pred_fallthru
      _
    // Predicated region
    $region22: #{tpu_custom_call.1} parent=1 // pred_check
      _
    $region23: #{tpu_custom_call.1} parent=1 // pred_check_branch
      %80 = sbr.rel (0) target = $region25
    $region24: #{tpu_custom_call.1} parent=1 // pred_region
      %82 = dma.done [#allocation3], 256
    $region25: #{tpu_custom_call.1} parent=1 // pred_fallthru
      _
    // Predicated region
    $region26: #{tpu_custom_call.1} parent=1 // pred_check
      _
    $region27: #{tpu_custom_call.1} parent=1 // pred_check_branch
      %84 = sbr.rel (0) target = $region29
    $region28: #{tpu_custom_call.1} parent=1 // pred_region
      %86 = dma.done [#allocation6], 1024
    $region29: #{tpu_custom_call.1} parent=1 // pred_fallthru
      _
    // Predicated region
    $region30: #{tpu_custom_call.1} parent=1 // pred_check
      _
    $region31: #{tpu_custom_call.1} parent=1 // pred_check_branch
      %88 = sbr.rel (0) target = $region33
    $region32: #{tpu_custom_call.1} parent=1 // pred_region
      %90 = dma.done [#allocation6], 1536
    $region33: #{tpu_custom_call.1} parent=1 // pred_fallthru
      _
    // Predicated region
    $region34: #{tpu_custom_call.1} parent=1 // pred_check
      _
    $region35: #{tpu_custom_call.1} parent=1 // pred_check_branch
      %92 = sbr.rel (0) target = $region37
    $region36: #{tpu_custom_call.1} parent=1 // pred_region
      %94 = dma.done [#allocation9], 512
    $region37: #{tpu_custom_call.1} parent=1 // pred_fallthru
      _
    // Predicated region
    $region38: #{tpu_custom_call.1} parent=1 // pred_check
      _
    $region39: #{tpu_custom_call.1} parent=1 // pred_check_branch
      %96 = sbr.rel (0) target = $region41
    $region40: #{tpu_custom_call.1} parent=1 // pred_region
      %98 = dma.done [#allocation9], 256
    $region41: #{tpu_custom_call.1} parent=1 // pred_fallthru
      _
    %v100 = vld [vmem:[#allocation2] sm:$0xff]
    %v101 = vld [vmem:[#allocation2 + $0x8] sm:$0xff]
    %v102 = vld [vmem:[#allocation5] sm:$0xff]
    %v103 = vld [vmem:[#allocation5 + $0x8] sm:$0xff]
    %v104 = vld [vmem:[#allocation5 + $0x10] sm:$0xff]
    %v105 = vld [vmem:[#allocation5 + $0x18] sm:$0xff]
    %v106 = vld [vmem:[#allocation5 + $0x20] sm:$0xff]
    %v107 = vld [vmem:[#allocation5 + $0x28] sm:$0xff]
    %v108 = vld [vmem:[#allocation5 + $0x30] sm:$0xff]
    %v109 = vld [vmem:[#allocation5 + $0x38] sm:$0xff]
    %v110 = vld [vmem:[#allocation7] sm:$0xff]
    %v111 = vld [vmem:[#allocation7 + $0x8] sm:$0xf]
    %v112 = vld [vmem:[#allocation7 + $0xc] sm:$0xff]
    %v113 = vld [vmem:[#allocation7 + $0x14] sm:$0xf]
    %v114 = vld [vmem:[#allocation7 + $0x18] sm:$0xff]
    %v115 = vld [vmem:[#allocation7 + $0x20] sm:$0xf]
    %v116 = vld [vmem:[#allocation7 + $0x24] sm:$0xff]
    %v117 = vld [vmem:[#allocation7 + $0x2c] sm:$0xf]
    %v118 = vld [vmem:[#allocation8] sm:$0xf]
    %v119 = vld [vmem:[#allocation8 + $0x4] sm:$0xf]
    %v120 = vld [vmem:[#allocation8 + $0x8] sm:$0xf]
    %v121 = vld [vmem:[#allocation8 + $0xc] sm:$0xf]
    %v122 = vld [vmem:[#allocation10] sm:$0xff]
    %v123 = vpack.c.bf16 %v101, %v100
    %v124 = vperm.slane %v122, 0
    %v129 = vunpack.c.l.b16 %v110
    %v130 = vunpack.c.l.b16 %v112
    %v131 = vunpack.c.l.b16 %v114
    %v132 = vunpack.c.l.b16 %v116
    %v133 = vpack.c.b16 %v130, %v129
    %v134 = vpack.c.b16 %v132, %v131
    %vm137 = vcmask 261120
    %v139 = vsel %vm137, %v123, 0
    %141 = vmatpush.bf16.msra.mxu0 0
    %142 = vmatpush.bf16.msra.mxu0 0
    %143 = vmatpush.bf16.msra.mxu0 0
    %144 = vmatpush.bf16.msra.mxu0 0
    %145 = vmatpush.bf16.msra.mxu0 0
    %146 = vmatpush.bf16.msra.mxu0 0
    %147 = vmatpush.bf16.msra.mxu0 %v134
    %148 = vmatpush.bf16.msra.mxu0 %v133
    %149 = vmatmul.bf16.gmra.mxu0 %v139
    %v150 = vpop.f32.mrf.mxu0
    %v151 = vadd.f32 %v124, %v150
    %v152 = vpop.f32.mrf.mxu0
    %v153 = vadd.f32 %v124, %v152
    %154 = vdwg.mxu0
    %156 = vrot.lane.b32.xlu0 %v151, 120
    %v157 = vpop.permute.xlu0 %156
    %160 = vrot.lane.b32.xlu0 %v153, 120
    %v161 = vpop.permute.xlu0 %160
    %163 = vrot.lane.b32.xlu0 %v151, 112
    %v164 = vpop.permute.xlu0 %163
    %166 = vrot.lane.b32.xlu0 %v153, 112
    %v167 = vpop.permute.xlu0 %166
    %169 = vrot.lane.b32.xlu0 %v151, 104
    %v170 = vpop.permute.xlu0 %169
    %172 = vrot.lane.b32.xlu0 %v153, 104
    %v173 = vpop.permute.xlu0 %172
    %v175 = vpack.c.bf16 %v151, %v151
    %v176 = vpack.c.bf16 %v153, %v153
    %v177 = vpack.c.bf16 %v157, %v157
    %v178 = vpack.c.bf16 %v161, %v161
    %v179 = vpack.c.bf16 %v164, %v164
    %v180 = vpack.c.bf16 %v167, %v167
    %v181 = vpack.c.bf16 %v170, %v170
    %v182 = vpack.c.bf16 %v173, %v173
    %v184 = vunpack.c.l.b16 %v175
    %v185 = vpack.c.b16 %v184, %v184
    %186 = vrot.lane.b32.xlu0 %v185, 96
    %v187 = vpop.permute.xlu0 %186
    %vm188 = vcmask 64512
    %v190 = vsel %vm188, %v175, 0
    %v193 = vsel %vm188, %v187, 0
    %195 = vmatpush.bf16.xpose.msra.mxu0 0
    %196 = vmatpush.bf16.xpose.msra.mxu0 0
    %197 = vmatpush.bf16.xpose.msra.mxu0 0
    %198 = vmatpush.bf16.xpose.msra.mxu0 0
    %199 = vmatpush.bf16.xpose.msra.mxu0 0
    %200 = vmatpush.bf16.xpose.msra.mxu0 0
    %201 = vmatpush.bf16.xpose.msra.mxu0 0
    %202 = vmatpush.bf16.xpose.msra.mxu0 %v193
    %203 = vmatmul.bf16.gmra.mxu0 %v190
    %v204 = vpop.f32.mrf.mxu0
    %v205 = vadd.f32 0.0, %v204
    %v206 = vpop.f32.mrf.mxu0
    %207 = vdwg.mxu0
    %v209 = vunpack.c.l.b16 %v176
    %v210 = vpack.c.b16 %v209, %v209
    %211 = vrot.lane.b32.xlu0 %v210, 96
    %v212 = vpop.permute.xlu0 %211
    %v214 = vsel %vm188, %v176, 0
    %v217 = vsel %vm188, %v212, 0
    %219 = vmatpush.bf16.xpose.msra.mxu0 0
    %220 = vmatpush.bf16.xpose.msra.mxu0 0
    %221 = vmatpush.bf16.xpose.msra.mxu0 0
    %222 = vmatpush.bf16.xpose.msra.mxu0 0
    %223 = vmatpush.bf16.xpose.msra.mxu0 0
    %224 = vmatpush.bf16.xpose.msra.mxu0 0
    %225 = vmatpush.bf16.xpose.msra.mxu0 0
    %226 = vmatpush.bf16.xpose.msra.mxu0 %v217
    %227 = vmatmul.bf16.gmra.mxu0 %v214
    %v228 = vpop.f32.mrf.mxu0
    %v229 = vadd.f32 0.0, %v228
    %v230 = vpop.f32.mrf.mxu0
    %231 = vdwg.mxu0
    %v233 = vunpack.c.l.b16 %v177
    %v234 = vpack.c.b16 %v233, %v233
    %235 = vrot.lane.b32.xlu0 %v234, 96
    %v236 = vpop.permute.xlu0 %235
    %v238 = vsel %vm188, %v177, 0
    %v241 = vsel %vm188, %v236, 0
    %243 = vmatpush.bf16.xpose.msra.mxu0 0
    %244 = vmatpush.bf16.xpose.msra.mxu0 0
    %245 = vmatpush.bf16.xpose.msra.mxu0 0
    %246 = vmatpush.bf16.xpose.msra.mxu0 0
    %247 = vmatpush.bf16.xpose.msra.mxu0 0
    %248 = vmatpush.bf16.xpose.msra.mxu0 0
    %249 = vmatpush.bf16.xpose.msra.mxu0 0
    %250 = vmatpush.bf16.xpose.msra.mxu0 %v241
    %251 = vmatmul.bf16.gmra.mxu0 %v238
    %v252 = vpop.f32.mrf.mxu0
    %v253 = vadd.f32 0.0, %v252
    %v254 = vpop.f32.mrf.mxu0
    %255 = vdwg.mxu0
    %v257 = vunpack.c.l.b16 %v178
    %v258 = vpack.c.b16 %v257, %v257
    %259 = vrot.lane.b32.xlu0 %v258, 96
    %v260 = vpop.permute.xlu0 %259
    %v262 = vsel %vm188, %v178, 0
    %v265 = vsel %vm188, %v260, 0
    %267 = vmatpush.bf16.xpose.msra.mxu0 0
    %268 = vmatpush.bf16.xpose.msra.mxu0 0
    %269 = vmatpush.bf16.xpose.msra.mxu0 0
    %270 = vmatpush.bf16.xpose.msra.mxu0 0
    %271 = vmatpush.bf16.xpose.msra.mxu0 0
    %272 = vmatpush.bf16.xpose.msra.mxu0 0
    %273 = vmatpush.bf16.xpose.msra.mxu0 0
    %274 = vmatpush.bf16.xpose.msra.mxu0 %v265
    %275 = vmatmul.bf16.gmra.mxu0 %v262
    %v276 = vpop.f32.mrf.mxu0
    %v277 = vadd.f32 0.0, %v276
    %v278 = vpop.f32.mrf.mxu0
    %279 = vdwg.mxu0
    %v281 = vunpack.c.l.b16 %v179
    %v282 = vpack.c.b16 %v281, %v281
    %283 = vrot.lane.b32.xlu0 %v282, 96
    %v284 = vpop.permute.xlu0 %283
    %v286 = vsel %vm188, %v179, 0
    %v289 = vsel %vm188, %v284, 0
    %291 = vmatpush.bf16.xpose.msra.mxu0 0
    %292 = vmatpush.bf16.xpose.msra.mxu0 0
    %293 = vmatpush.bf16.xpose.msra.mxu0 0
    %294 = vmatpush.bf16.xpose.msra.mxu0 0
    %295 = vmatpush.bf16.xpose.msra.mxu0 0
    %296 = vmatpush.bf16.xpose.msra.mxu0 0
    %297 = vmatpush.bf16.xpose.msra.mxu0 0
    %298 = vmatpush.bf16.xpose.msra.mxu0 %v289
    %299 = vmatmul.bf16.gmra.mxu0 %v286
    %v300 = vpop.f32.mrf.mxu0
    %v301 = vadd.f32 0.0, %v300
    %v302 = vpop.f32.mrf.mxu0
    %303 = vdwg.mxu0
    %v305 = vunpack.c.l.b16 %v180
    %v306 = vpack.c.b16 %v305, %v305
    %307 = vrot.lane.b32.xlu0 %v306, 96
    %v308 = vpop.permute.xlu0 %307
    %v310 = vsel %vm188, %v180, 0
    %v313 = vsel %vm188, %v308, 0
    %315 = vmatpush.bf16.xpose.msra.mxu0 0
    %316 = vmatpush.bf16.xpose.msra.mxu0 0
    %317 = vmatpush.bf16.xpose.msra.mxu0 0
    %318 = vmatpush.bf16.xpose.msra.mxu0 0
    %319 = vmatpush.bf16.xpose.msra.mxu0 0
    %320 = vmatpush.bf16.xpose.msra.mxu0 0
    %321 = vmatpush.bf16.xpose.msra.mxu0 0
    %322 = vmatpush.bf16.xpose.msra.mxu0 %v313
    %323 = vmatmul.bf16.gmra.mxu0 %v310
    %v324 = vpop.f32.mrf.mxu0
    %v325 = vadd.f32 0.0, %v324
    %v326 = vpop.f32.mrf.mxu0
    %327 = vdwg.mxu0
    %v329 = vunpack.c.l.b16 %v181
    %v330 = vpack.c.b16 %v329, %v329
    %331 = vrot.lane.b32.xlu0 %v330, 96
    %v332 = vpop.permute.xlu0 %331
    %v334 = vsel %vm188, %v181, 0
    %v337 = vsel %vm188, %v332, 0
    %339 = vmatpush.bf16.xpose.msra.mxu0 0
    %340 = vmatpush.bf16.xpose.msra.mxu0 0
    %341 = vmatpush.bf16.xpose.msra.mxu0 0
    %342 = vmatpush.bf16.xpose.msra.mxu0 0
    %343 = vmatpush.bf16.xpose.msra.mxu0 0
    %344 = vmatpush.bf16.xpose.msra.mxu0 0
    %345 = vmatpush.bf16.xpose.msra.mxu0 0
    %346 = vmatpush.bf16.xpose.msra.mxu0 %v337
    %347 = vmatmul.bf16.gmra.mxu0 %v334
    %v348 = vpop.f32.mrf.mxu0
    %v349 = vadd.f32 0.0, %v348
    %v350 = vpop.f32.mrf.mxu0
    %351 = vdwg.mxu0
    %v353 = vunpack.c.l.b16 %v182
    %v354 = vpack.c.b16 %v353, %v353
    %355 = vrot.lane.b32.xlu0 %v354, 96
    %v356 = vpop.permute.xlu0 %355
    %v358 = vsel %vm188, %v182, 0
    %v361 = vsel %vm188, %v356, 0
    %363 = vmatpush.bf16.xpose.msra.mxu0 0
    %364 = vmatpush.bf16.xpose.msra.mxu0 0
    %365 = vmatpush.bf16.xpose.msra.mxu0 0
    %366 = vmatpush.bf16.xpose.msra.mxu0 0
    %367 = vmatpush.bf16.xpose.msra.mxu0 0
    %368 = vmatpush.bf16.xpose.msra.mxu0 0
    %369 = vmatpush.bf16.xpose.msra.mxu0 0
    %370 = vmatpush.bf16.xpose.msra.mxu0 %v361
    %371 = vmatmul.bf16.gmra.mxu0 %v358
    %v372 = vpop.f32.mrf.mxu0
    %v373 = vadd.f32 0.0, %v372
    %v374 = vpop.f32.mrf.mxu0
    %375 = vdwg.mxu0
    %v376 = vmul.f32 %v205, 0.35355338
    %v377 = vmul.f32 %v229, 0.35355338
    %v378 = vmul.f32 %v253, 0.35355338
    %v379 = vmul.f32 %v277, 0.35355338
    %v380 = vmul.f32 %v301, 0.35355338
    %v381 = vmul.f32 %v325, 0.35355338
    %v382 = vmul.f32 %v349, 0.35355338
    %v383 = vmul.f32 %v373, 0.35355338
    %v384 = vadd.f32 %v376, %v102
    %v385 = vadd.f32 %v377, %v103
    %v386 = vadd.f32 %v378, %v104
    %v387 = vadd.f32 %v379, %v105
    %v388 = vadd.f32 %v380, %v106
    %v389 = vadd.f32 %v381, %v107
    %v390 = vadd.f32 %v382, %v108
    %v391 = vadd.f32 %v383, %v109
    %v392 = vsel %vm188, %v384, -inf
    %393 = vmax.xlane.f32.xlu0 %v392
    %v394 = vpop.xlane.xlu0 %393
    %v395 = vsel %vm188, %v385, -inf
    %396 = vmax.xlane.f32.xlu0 %v395
    %v397 = vpop.xlane.xlu0 %396
    %v398 = vsel %vm188, %v386, -inf
    %399 = vmax.xlane.f32.xlu0 %v398
    %v400 = vpop.xlane.xlu0 %399
    %v401 = vsel %vm188, %v387, -inf
    %402 = vmax.xlane.f32.xlu0 %v401
    %v403 = vpop.xlane.xlu0 %402
    %v404 = vsel %vm188, %v388, -inf
    %405 = vmax.xlane.f32.xlu0 %v404
    %v406 = vpop.xlane.xlu0 %405
    %v407 = vsel %vm188, %v389, -inf
    %408 = vmax.xlane.f32.xlu0 %v407
    %v409 = vpop.xlane.xlu0 %408
    %v410 = vsel %vm188, %v390, -inf
    %411 = vmax.xlane.f32.xlu0 %v410
    %v412 = vpop.xlane.xlu0 %411
    %v413 = vsel %vm188, %v391, -inf
    %414 = vmax.xlane.f32.xlu0 %v413
    %v415 = vpop.xlane.xlu0 %414
    %v416 = vsub.f32 %v384, %v394
    %v417 = vsub.f32 %v385, %v397
    %v418 = vsub.f32 %v386, %v400
    %v419 = vsub.f32 %v387, %v403
    %v420 = vsub.f32 %v388, %v406
    %v421 = vsub.f32 %v389, %v409
    %v422 = vsub.f32 %v390, %v412
    %v423 = vsub.f32 %v391, %v415
    %v424 = vmul.f32 %v416, 1.442695
    %v425 = vpow.pop %v424
    %v426 = vmul.f32 %v417, 1.442695
    %v427 = vpow.pop %v426
    %v428 = vmul.f32 %v418, 1.442695
    %v429 = vpow.pop %v428
    %v430 = vmul.f32 %v419, 1.442695
    %v431 = vpow.pop %v430
    %v432 = vmul.f32 %v420, 1.442695
    %v433 = vpow.pop %v432
    %v434 = vmul.f32 %v421, 1.442695
    %v435 = vpow.pop %v434
    %v436 = vmul.f32 %v422, 1.442695
    %v437 = vpow.pop %v436
    %v438 = vmul.f32 %v423, 1.442695
    %v439 = vpow.pop %v438
    %v440 = vsel %vm188, %v425, 0.0
    %441 = vadd.xlane.f32.xlu0 %v440
    %v442 = vpop.xlane.xlu0 %441
    %v443 = vsel %vm188, %v427, 0.0
    %444 = vadd.xlane.f32.xlu0 %v443
    %v445 = vpop.xlane.xlu0 %444
    %v446 = vsel %vm188, %v429, 0.0
    %447 = vadd.xlane.f32.xlu0 %v446
    %v448 = vpop.xlane.xlu0 %447
    %v449 = vsel %vm188, %v431, 0.0
    %450 = vadd.xlane.f32.xlu0 %v449
    %v451 = vpop.xlane.xlu0 %450
    %v452 = vsel %vm188, %v433, 0.0
    %453 = vadd.xlane.f32.xlu0 %v452
    %v454 = vpop.xlane.xlu0 %453
    %v455 = vsel %vm188, %v435, 0.0
    %456 = vadd.xlane.f32.xlu0 %v455
    %v457 = vpop.xlane.xlu0 %456
    %v458 = vsel %vm188, %v437, 0.0
    %459 = vadd.xlane.f32.xlu0 %v458
    %v460 = vpop.xlane.xlu0 %459
    %v461 = vsel %vm188, %v439, 0.0
    %462 = vadd.xlane.f32.xlu0 %v461
    %v463 = vpop.xlane.xlu0 %462
    %v464 = vrcp.pop %v442
    %v465 = vrcp.pop %v445
    %v466 = vrcp.pop %v448
    %v467 = vrcp.pop %v451
    %v468 = vrcp.pop %v454
    %v469 = vrcp.pop %v457
    %v470 = vrcp.pop %v460
    %v471 = vrcp.pop %v463
    %v472 = vmul.f32 %v425, %v464
    %v473 = vmul.f32 %v427, %v465
    %v474 = vmul.f32 %v429, %v466
    %v475 = vmul.f32 %v431, %v467
    %v476 = vmul.f32 %v433, %v468
    %v477 = vmul.f32 %v435, %v469
    %v478 = vmul.f32 %v437, %v470
    %v479 = vmul.f32 %v439, %v471
    %v480 = vpack.c.bf16 %v472, %v472
    %v481 = vpack.c.bf16 %v473, %v473
    %v482 = vpack.c.bf16 %v474, %v474
    %v483 = vpack.c.bf16 %v475, %v475
    %v484 = vpack.c.bf16 %v476, %v476
    %v485 = vpack.c.bf16 %v477, %v477
    %v486 = vpack.c.bf16 %v478, %v478
    %v487 = vpack.c.bf16 %v479, %v479
    %488 = vrot.lane.b32.xlu0 %v185, 64
    %v489 = vpop.permute.xlu0 %488
    %v491 = vsel %vm188, %v480, 0
    %vm493 = vcmask 1043456
    %v495 = vsel %vm493, %v489, 0
    %497 = vmatpush.bf16.msra.mxu0 0
    %498 = vmatpush.bf16.msra.mxu0 0
    %499 = vmatpush.bf16.msra.mxu0 0
    %500 = vmatpush.bf16.msra.mxu0 0
    %501 = vmatpush.bf16.msra.mxu0 0
    %502 = vmatpush.bf16.msra.mxu0 0
    %503 = vmatpush.bf16.msra.mxu0 0
    %504 = vmatpush.bf16.msra.mxu0 %v495
    %505 = vmatmul.bf16.gmra.mxu0 %v491
    %v506 = vpop.f32.mrf.mxu0
    %v507 = vadd.f32 0.0, %v506
    %v508 = vpop.f32.mrf.mxu0
    %509 = vdwg.mxu0
    %510 = vrot.lane.b32.xlu0 %v210, 64
    %v511 = vpop.permute.xlu0 %510
    %v513 = vsel %vm188, %v481, 0
    %v516 = vsel %vm493, %v511, 0
    %518 = vmatpush.bf16.msra.mxu0 0
    %519 = vmatpush.bf16.msra.mxu0 0
    %520 = vmatpush.bf16.msra.mxu0 0
    %521 = vmatpush.bf16.msra.mxu0 0
    %522 = vmatpush.bf16.msra.mxu0 0
    %523 = vmatpush.bf16.msra.mxu0 0
    %524 = vmatpush.bf16.msra.mxu0 0
    %525 = vmatpush.bf16.msra.mxu0 %v516
    %526 = vmatmul.bf16.gmra.mxu0 %v513
    %v527 = vpop.f32.mrf.mxu0
    %v528 = vadd.f32 0.0, %v527
    %v529 = vpop.f32.mrf.mxu0
    %530 = vdwg.mxu0
    %531 = vrot.lane.b32.xlu0 %v234, 64
    %v532 = vpop.permute.xlu0 %531
    %v534 = vsel %vm188, %v482, 0
    %v537 = vsel %vm493, %v532, 0
    %539 = vmatpush.bf16.msra.mxu0 0
    %540 = vmatpush.bf16.msra.mxu0 0
    %541 = vmatpush.bf16.msra.mxu0 0
    %542 = vmatpush.bf16.msra.mxu0 0
    %543 = vmatpush.bf16.msra.mxu0 0
    %544 = vmatpush.bf16.msra.mxu0 0
    %545 = vmatpush.bf16.msra.mxu0 0
    %546 = vmatpush.bf16.msra.mxu0 %v537
    %547 = vmatmul.bf16.gmra.mxu0 %v534
    %v548 = vpop.f32.mrf.mxu0
    %v549 = vadd.f32 0.0, %v548
    %v550 = vpop.f32.mrf.mxu0
    %551 = vdwg.mxu0
    %552 = vrot.lane.b32.xlu0 %v258, 64
    %v553 = vpop.permute.xlu0 %552
    %v555 = vsel %vm188, %v483, 0
    %v558 = vsel %vm493, %v553, 0
    %560 = vmatpush.bf16.msra.mxu0 0
    %561 = vmatpush.bf16.msra.mxu0 0
    %562 = vmatpush.bf16.msra.mxu0 0
    %563 = vmatpush.bf16.msra.mxu0 0
    %564 = vmatpush.bf16.msra.mxu0 0
    %565 = vmatpush.bf16.msra.mxu0 0
    %566 = vmatpush.bf16.msra.mxu0 0
    %567 = vmatpush.bf16.msra.mxu0 %v558
    %568 = vmatmul.bf16.gmra.mxu0 %v555
    %v569 = vpop.f32.mrf.mxu0
    %v570 = vadd.f32 0.0, %v569
    %v571 = vpop.f32.mrf.mxu0
    %572 = vdwg.mxu0
    %573 = vrot.lane.b32.xlu0 %v282, 64
    %v574 = vpop.permute.xlu0 %573
    %v576 = vsel %vm188, %v484, 0
    %v579 = vsel %vm493, %v574, 0
    %581 = vmatpush.bf16.msra.mxu0 0
    %582 = vmatpush.bf16.msra.mxu0 0
    %583 = vmatpush.bf16.msra.mxu0 0
    %584 = vmatpush.bf16.msra.mxu0 0
    %585 = vmatpush.bf16.msra.mxu0 0
    %586 = vmatpush.bf16.msra.mxu0 0
    %587 = vmatpush.bf16.msra.mxu0 0
    %588 = vmatpush.bf16.msra.mxu0 %v579
    %589 = vmatmul.bf16.gmra.mxu0 %v576
    %v590 = vpop.f32.mrf.mxu0
    %v591 = vadd.f32 0.0, %v590
    %v592 = vpop.f32.mrf.mxu0
    %593 = vdwg.mxu0
    %594 = vrot.lane.b32.xlu0 %v306, 64
    %v595 = vpop.permute.xlu0 %594
    %v597 = vsel %vm188, %v485, 0
    %v600 = vsel %vm493, %v595, 0
    %602 = vmatpush.bf16.msra.mxu0 0
    %603 = vmatpush.bf16.msra.mxu0 0
    %604 = vmatpush.bf16.msra.mxu0 0
    %605 = vmatpush.bf16.msra.mxu0 0
    %606 = vmatpush.bf16.msra.mxu0 0
    %607 = vmatpush.bf16.msra.mxu0 0
    %608 = vmatpush.bf16.msra.mxu0 0
    %609 = vmatpush.bf16.msra.mxu0 %v600
    %610 = vmatmul.bf16.gmra.mxu0 %v597
    %v611 = vpop.f32.mrf.mxu0
    %v612 = vadd.f32 0.0, %v611
    %v613 = vpop.f32.mrf.mxu0
    %614 = vdwg.mxu0
    %615 = vrot.lane.b32.xlu0 %v330, 64
    %v616 = vpop.permute.xlu0 %615
    %v618 = vsel %vm188, %v486, 0
    %v621 = vsel %vm493, %v616, 0
    %623 = vmatpush.bf16.msra.mxu0 0
    %624 = vmatpush.bf16.msra.mxu0 0
    %625 = vmatpush.bf16.msra.mxu0 0
    %626 = vmatpush.bf16.msra.mxu0 0
    %627 = vmatpush.bf16.msra.mxu0 0
    %628 = vmatpush.bf16.msra.mxu0 0
    %629 = vmatpush.bf16.msra.mxu0 0
    %630 = vmatpush.bf16.msra.mxu0 %v621
    %631 = vmatmul.bf16.gmra.mxu0 %v618
    %v632 = vpop.f32.mrf.mxu0
    %v633 = vadd.f32 0.0, %v632
    %v634 = vpop.f32.mrf.mxu0
    %635 = vdwg.mxu0
    %636 = vrot.lane.b32.xlu0 %v354, 64
    %v637 = vpop.permute.xlu0 %636
    %v639 = vsel %vm188, %v487, 0
    %v642 = vsel %vm493, %v637, 0
    %644 = vmatpush.bf16.msra.mxu0 0
    %645 = vmatpush.bf16.msra.mxu0 0
    %646 = vmatpush.bf16.msra.mxu0 0
    %647 = vmatpush.bf16.msra.mxu0 0
    %648 = vmatpush.bf16.msra.mxu0 0
    %649 = vmatpush.bf16.msra.mxu0 0
    %650 = vmatpush.bf16.msra.mxu0 0
    %651 = vmatpush.bf16.msra.mxu0 %v642
    %652 = vmatmul.bf16.gmra.mxu0 %v639
    %v653 = vpop.f32.mrf.mxu0
    %v654 = vadd.f32 0.0, %v653
    %v655 = vpop.f32.mrf.mxu0
    %656 = vdwg.mxu0
    %v657 = vpack.c.bf16 %v507, %v507
    %v658 = vpack.c.bf16 %v528, %v528
    %v659 = vpack.c.bf16 %v549, %v549
    %v660 = vpack.c.bf16 %v570, %v570
    %v661 = vpack.c.bf16 %v591, %v591
    %v662 = vpack.c.bf16 %v612, %v612
    %v663 = vpack.c.bf16 %v633, %v633
    %v664 = vpack.c.bf16 %v654, %v654
    %v667 = vunpack.c.l.b16 %v657
    %v668 = vunpack.c.l.b16 %v658
    %v669 = vpack.c.b16 %v668, %v667
    %v671 = vsel %vm188, %v669, 0
    %v674 = vsel %vm493, %v118, 0
    %676 = vmatpush.bf16.msra.mxu0 0
    %677 = vmatpush.bf16.msra.mxu0 0
    %678 = vmatpush.bf16.msra.mxu0 0
    %679 = vmatpush.bf16.msra.mxu0 0
    %680 = vmatpush.bf16.msra.mxu0 0
    %681 = vmatpush.bf16.msra.mxu0 0
    %682 = vmatpush.bf16.msra.mxu0 0
    %683 = vmatpush.bf16.msra.mxu0 %v674
    %684 = vmatmul.bf16.gmra.mxu0 %v671
    %v685 = vpop.f32.mrf.mxu0
    %v686 = vadd.f32 0.0, %v685
    %v687 = vpop.f32.mrf.mxu0
    %v688 = vadd.f32 0.0, %v687
    %689 = vdwg.mxu0
    %v692 = vunpack.c.l.b16 %v659
    %v693 = vunpack.c.l.b16 %v660
    %v694 = vpack.c.b16 %v693, %v692
    %v696 = vsel %vm188, %v694, 0
    %v699 = vsel %vm493, %v119, 0
    %701 = vmatpush.bf16.msra.mxu0 0
    %702 = vmatpush.bf16.msra.mxu0 0
    %703 = vmatpush.bf16.msra.mxu0 0
    %704 = vmatpush.bf16.msra.mxu0 0
    %705 = vmatpush.bf16.msra.mxu0 0
    %706 = vmatpush.bf16.msra.mxu0 0
    %707 = vmatpush.bf16.msra.mxu0 0
    %708 = vmatpush.bf16.msra.mxu0 %v699
    %709 = vmatmul.bf16.gmra.mxu0 %v696
    %v710 = vpop.f32.mrf.mxu0
    %v711 = vadd.f32 0.0, %v710
    %v712 = vpop.f32.mrf.mxu0
    %v713 = vadd.f32 0.0, %v712
    %714 = vdwg.mxu0
    %v717 = vunpack.c.l.b16 %v661
    %v718 = vunpack.c.l.b16 %v662
    %v719 = vpack.c.b16 %v718, %v717
    %v721 = vsel %vm188, %v719, 0
    %v724 = vsel %vm493, %v120, 0
    %726 = vmatpush.bf16.msra.mxu0 0
    %727 = vmatpush.bf16.msra.mxu0 0
    %728 = vmatpush.bf16.msra.mxu0 0
    %729 = vmatpush.bf16.msra.mxu0 0
    %730 = vmatpush.bf16.msra.mxu0 0
    %731 = vmatpush.bf16.msra.mxu0 0
    %732 = vmatpush.bf16.msra.mxu0 0
    %733 = vmatpush.bf16.msra.mxu0 %v724
    %734 = vmatmul.bf16.gmra.mxu0 %v721
    %v735 = vpop.f32.mrf.mxu0
    %v736 = vadd.f32 0.0, %v735
    %v737 = vpop.f32.mrf.mxu0
    %v738 = vadd.f32 0.0, %v737
    %739 = vdwg.mxu0
    %v742 = vunpack.c.l.b16 %v663
    %v743 = vunpack.c.l.b16 %v664
    %v744 = vpack.c.b16 %v743, %v742
    %v746 = vsel %vm188, %v744, 0
    %v749 = vsel %vm493, %v121, 0
    %751 = vmatpush.bf16.msra.mxu0 0
    %752 = vmatpush.bf16.msra.mxu0 0
    %753 = vmatpush.bf16.msra.mxu0 0
    %754 = vmatpush.bf16.msra.mxu0 0
    %755 = vmatpush.bf16.msra.mxu0 0
    %756 = vmatpush.bf16.msra.mxu0 0
    %757 = vmatpush.bf16.msra.mxu0 0
    %758 = vmatpush.bf16.msra.mxu0 %v749
    %759 = vmatmul.bf16.gmra.mxu0 %v746
    %v760 = vpop.f32.mrf.mxu0
    %v761 = vadd.f32 0.0, %v760
    %v762 = vpop.f32.mrf.mxu0
    %v763 = vadd.f32 0.0, %v762
    %764 = vdwg.mxu0
    %v765 = vsel %vm137, %v686, 0.0
    %v766 = vsel %vm137, %v711, 0.0
    %v767 = vadd.f32 %v765, %v766
    %v768 = vsel %vm137, %v736, 0.0
    %v769 = vadd.f32 %v767, %v768
    %v770 = vsel %vm137, %v761, 0.0
    %v771 = vadd.f32 %v769, %v770
    %v772 = vsel %vm137, %v688, 0.0
    %v773 = vsel %vm137, %v713, 0.0
    %v774 = vadd.f32 %v772, %v773
    %v775 = vsel %vm137, %v738, 0.0
    %v776 = vadd.f32 %v774, %v775
    %v777 = vsel %vm137, %v763, 0.0
    %v778 = vadd.f32 %v776, %v777
    %v779 = vperm.slane %v122, 1
    %v780 = vadd.f32 %v771, %v779
    %v781 = vadd.f32 %v778, %v779
    %v782 = vadd.f32 %v780, %v100
    %v783 = vadd.f32 %v781, %v101
    %v784 = vsel %vm137, %v782, 0.0
    %785 = vadd.xlane.f32.xlu0 %v784
    %v786 = vpop.xlane.xlu0 %785
    %v787 = vsel %vm137, %v783, 0.0
    %788 = vadd.xlane.f32.xlu0 %v787
    %v789 = vpop.xlane.xlu0 %788
    %v790 = vrcp.pop 32.0
    %v791 = vmul.f32 32.0, %v790
    %v792 = vsub.f32 1.0, %v791
    %v793 = vmul.f32 %v790, %v792
    %v794 = vadd.f32 %v790, %v793
    %vm795 = vweird.f32 %v790
    %v796 = vsel %vm795, %v790, %v794
    %v797 = vmul.f32 %v786, %v796
    %v798 = vmul.f32 %v789, %v796
    %v799 = vsub.f32 %v782, %v797
    %v800 = vsub.f32 %v783, %v798
    %v801 = vmul.f32 %v799, %v799
    %v802 = vmul.f32 %v800, %v800
    %v803 = vsel %vm137, %v801, 0.0
    %804 = vadd.xlane.f32.xlu0 %v803
    %v805 = vpop.xlane.xlu0 %804
    %v806 = vsel %vm137, %v802, 0.0
    %807 = vadd.xlane.f32.xlu0 %v806
    %v808 = vpop.xlane.xlu0 %807
    %v809 = vmul.f32 %v805, %v796
    %v810 = vmul.f32 %v808, %v796
    %v811 = vadd.f32 %v809, 1e-12
    %v812 = vadd.f32 %v810, 1e-12
    %v813 = vrsqrt.pop %v811
    %v814 = vmul.f32 %v813, %v811
    %v815 = vmul.f32 %v814, %v813
    %v816 = vmul.f32 0.5, %v815
    %v817 = vsub.f32 1.5, %v816
    %v818 = vmul.f32 %v813, %v817
    %vm819 = vweird.f32 %v811
    %vm820 = vweird.f32 %v813
    %vm821 = vmor %vm819, %vm820
    %v822 = vsel %vm821, %v813, %v818
    %v823 = vrsqrt.pop %v812
    %v824 = vmul.f32 %v823, %v812
    %v825 = vmul.f32 %v824, %v823
    %v826 = vmul.f32 0.5, %v825
    %v827 = vsub.f32 1.5, %v826
    %v828 = vmul.f32 %v823, %v827
    %vm829 = vweird.f32 %v812
    %vm830 = vweird.f32 %v823
    %vm831 = vmor %vm829, %vm830
    %v832 = vsel %vm831, %v823, %v828
    %v833 = vmul.f32 %v799, %v822
    %v834 = vmul.f32 %v800, %v832
    %v835 = vperm.slane %v122, 2
    %v836 = vmul.f32 %v833, %v835
    %v837 = vmul.f32 %v834, %v835
    %v838 = vperm.slane %v122, 3
    %v839 = vadd.f32 %v836, %v838
    %v840 = vadd.f32 %v837, %v838
    %v841 = vpack.c.bf16 %v840, %v839
    %v842 = vperm.slane %v122, 4
    %v843 = vunpack.c.h.b16 %v110
    %v844 = vunpack.c.h.b16 %v112
    %v845 = vunpack.c.h.b16 %v114
    %v846 = vunpack.c.h.b16 %v116
    %v847 = vpack.c.b16 %v844, %v843
    %v848 = vpack.c.b16 %v846, %v845
    %v852 = vsel %vm137, %v841, 0
    %854 = vmatpush.bf16.msra.mxu0 0
    %855 = vmatpush.bf16.msra.mxu0 0
    %856 = vmatpush.bf16.msra.mxu0 0
    %857 = vmatpush.bf16.msra.mxu0 0
    %858 = vmatpush.bf16.msra.mxu0 0
    %859 = vmatpush.bf16.msra.mxu0 0
    %860 = vmatpush.bf16.msra.mxu0 %v848
    %861 = vmatpush.bf16.msra.mxu0 %v847
    %862 = vmatmul.bf16.gmra.mxu0 %v852
    %v863 = vpop.f32.mrf.mxu0
    %v864 = vadd.f32 %v842, %v863
    %v865 = vpop.f32.mrf.mxu0
    %v866 = vadd.f32 %v842, %v865
    %867 = vdwg.mxu0
    %v868 = vmul.f32 %v864, 0.5
    %v869 = vmul.f32 %v866, 0.5
    %v870 = vmul.f32 %v864, 0.70710677
    %v871 = vmul.f32 %v866, 0.70710677
    %v872 = vmul.f32 %v870, %v870
    %v873 = vmin.f32 16.0, %v872
    %v874 = vmul.f32 %v873, 2.1237322e-06
    %v875 = vadd.f32 %v874, 0.00028619796
    %v876 = vmul.f32 %v873, %v875
    %v877 = vadd.f32 %v876, 0.0036580483
    %v878 = vmul.f32 %v873, %v877
    %v879 = vadd.f32 %v878, 0.05243302
    %v880 = vmul.f32 %v873, %v879
    %v881 = vadd.f32 %v880, 0.18741608
    %v882 = vmul.f32 %v873, %v881
    %v883 = vadd.f32 %v882, 1.1283791
    %v884 = vmul.f32 %v870, %v883
    %v885 = vmul.f32 %v873, 3.8918573e-05
    %v886 = vadd.f32 %v885, 0.001143296
    %v887 = vmul.f32 %v873, %v886
    %v888 = vadd.f32 %v887, 0.014752088
    %v889 = vmul.f32 %v873, %v888
    %v890 = vadd.f32 %v889, 0.112945676
    %v891 = vmul.f32 %v873, %v890
    %v892 = vadd.f32 %v891, 0.4994258
    %v893 = vmul.f32 %v873, %v892
    %v894 = vadd.f32 %v893, 1.0
    %v895 = vrcp.pop %v894
    %v896 = vmul.f32 %v894, %v895
    %v897 = vsub.f32 1.0, %v896
    %v898 = vmul.f32 %v895, %v897
    %v899 = vadd.f32 %v895, %v898
    %vm900 = vweird.f32 %v894
    %vm901 = vweird.f32 %v895
    %vm902 = vmor %vm900, %vm901
    %v903 = vsel %vm902, %v895, %v899
    %v904 = vand.u32 2147483647, %v894
    %vm905 = vcmp.eq.f32.partialorder %v904, 8.507059e+37
    %v906 = vand.u32 %v894, 2147483648
    %v907 = vor.u32 1.1754944e-38, %v906
    %v908 = vsel %vm905, %v907, %v903
    %v909 = vmul.f32 %v884, %v908
    %v910 = vmin.f32 %v909, 1.0
    %v911 = vmax.f32 %v910, -1.0
    %v912 = vmul.f32 %v871, %v871
    %v913 = vmin.f32 16.0, %v912
    %v914 = vmul.f32 %v913, 2.1237322e-06
    %v915 = vadd.f32 %v914, 0.00028619796
    %v916 = vmul.f32 %v913, %v915
    %v917 = vadd.f32 %v916, 0.0036580483
    %v918 = vmul.f32 %v913, %v917
    %v919 = vadd.f32 %v918, 0.05243302
    %v920 = vmul.f32 %v913, %v919
    %v921 = vadd.f32 %v920, 0.18741608
    %v922 = vmul.f32 %v913, %v921
    %v923 = vadd.f32 %v922, 1.1283791
    %v924 = vmul.f32 %v871, %v923
    %v925 = vmul.f32 %v913, 3.8918573e-05
    %v926 = vadd.f32 %v925, 0.001143296
    %v927 = vmul.f32 %v913, %v926
    %v928 = vadd.f32 %v927, 0.014752088
    %v929 = vmul.f32 %v913, %v928
    %v930 = vadd.f32 %v929, 0.112945676
    %v931 = vmul.f32 %v913, %v930
    %v932 = vadd.f32 %v931, 0.4994258
    %v933 = vmul.f32 %v913, %v932
    %v934 = vadd.f32 %v933, 1.0
    %v935 = vrcp.pop %v934
    %v936 = vmul.f32 %v934, %v935
    %v937 = vsub.f32 1.0, %v936
    %v938 = vmul.f32 %v935, %v937
    %v939 = vadd.f32 %v935, %v938
    %vm940 = vweird.f32 %v934
    %vm941 = vweird.f32 %v935
    %vm942 = vmor %vm940, %vm941
    %v943 = vsel %vm942, %v935, %v939
    %v944 = vand.u32 2147483647, %v934
    %vm945 = vcmp.eq.f32.partialorder %v944, 8.507059e+37
    %v946 = vand.u32 %v934, 2147483648
    %v947 = vor.u32 1.1754944e-38, %v946
    %v948 = vsel %vm945, %v947, %v943
    %v949 = vmul.f32 %v924, %v948
    %v950 = vmin.f32 %v949, 1.0
    %v951 = vmax.f32 %v950, -1.0
    %v952 = vadd.f32 %v911, 1.0
    %v953 = vadd.f32 %v951, 1.0
    %v954 = vmul.f32 %v868, %v952
    %v955 = vmul.f32 %v869, %v953
    %v956 = vpack.c.bf16 %v955, %v954
    %v957 = vperm.slane %v122, 5
    %v962 = vunpack.c.l.b16 %v111
    %v963 = vunpack.c.l.b16 %v113
    %v964 = vunpack.c.l.b16 %v115
    %v965 = vunpack.c.l.b16 %v117
    %v966 = vpack.c.b16 %v963, %v962
    %v967 = vpack.c.b16 %v965, %v964
    %vm968 = vcmask 523264
    %v970 = vsel %vm968, %v956, 0
    %v973 = vsel %vm968, %v966, 0
    %v976 = vsel %vm968, %v967, 0
    %978 = vmatpush.bf16.xpose.msra.mxu0 0
    %979 = vmatpush.bf16.xpose.msra.mxu0 0
    %980 = vmatpush.bf16.xpose.msra.mxu0 0
    %981 = vmatpush.bf16.xpose.msra.mxu0 0
    %982 = vmatpush.bf16.xpose.msra.mxu0 0
    %983 = vmatpush.bf16.xpose.msra.mxu0 0
    %984 = vmatpush.bf16.xpose.msra.mxu0 %v976
    %985 = vmatpush.bf16.xpose.msra.mxu0 %v973
    %986 = vmatmul.bf16.gmra.mxu0 %v970
    %v987 = vpop.f32.mrf.mxu0
    %v988 = vadd.f32 %v957, %v987
    %v989 = vpop.f32.mrf.mxu0
    %v990 = vadd.f32 %v957, %v989
    %991 = vdwg.mxu0
    %v992 = vadd.f32 %v988, %v839
    %v993 = vadd.f32 %v990, %v840
    %v994 = vsel %vm137, %v992, 0.0
    %995 = vadd.xlane.f32.xlu0 %v994
    %v996 = vpop.xlane.xlu0 %995
    %v997 = vsel %vm137, %v993, 0.0
    %998 = vadd.xlane.f32.xlu0 %v997
    %v999 = vpop.xlane.xlu0 %998
    %v1000 = vmul.f32 %v996, %v796
    %v1001 = vmul.f32 %v999, %v796
    %v1002 = vsub.f32 %v992, %v1000
    %v1003 = vsub.f32 %v993, %v1001
    %v1004 = vmul.f32 %v1002, %v1002
    %v1005 = vmul.f32 %v1003, %v1003
    %v1006 = vsel %vm137, %v1004, 0.0
    %1007 = vadd.xlane.f32.xlu0 %v1006
    %v1008 = vpop.xlane.xlu0 %1007
    %v1009 = vsel %vm137, %v1005, 0.0
    %1010 = vadd.xlane.f32.xlu0 %v1009
    %v1011 = vpop.xlane.xlu0 %1010
    %v1012 = vmul.f32 %v1008, %v796
    %v1013 = vmul.f32 %v1011, %v796
    %v1014 = vadd.f32 %v1012, 1e-12
    %v1015 = vadd.f32 %v1013, 1e-12
    %v1016 = vrsqrt.pop %v1014
    %v1017 = vmul.f32 %v1016, %v1014
    %v1018 = vmul.f32 %v1017, %v1016
    %v1019 = vmul.f32 0.5, %v1018
    %v1020 = vsub.f32 1.5, %v1019
    %v1021 = vmul.f32 %v1016, %v1020
    %vm1022 = vweird.f32 %v1014
    %vm1023 = vweird.f32 %v1016
    %vm1024 = vmor %vm1022, %vm1023
    %v1025 = vsel %vm1024, %v1016, %v1021
    %v1026 = vrsqrt.pop %v1015
    %v1027 = vmul.f32 %v1026, %v1015
    %v1028 = vmul.f32 %v1027, %v1026
    %v1029 = vmul.f32 0.5, %v1028
    %v1030 = vsub.f32 1.5, %v1029
    %v1031 = vmul.f32 %v1026, %v1030
    %vm1032 = vweird.f32 %v1015
    %vm1033 = vweird.f32 %v1026
    %vm1034 = vmor %vm1032, %vm1033
    %v1035 = vsel %vm1034, %v1026, %v1031
    %v1036 = vmul.f32 %v1002, %v1025
    %v1037 = vmul.f32 %v1003, %v1035
    %v1038 = vperm.slane %v122, 6
    %v1039 = vmul.f32 %v1036, %v1038
    %v1040 = vmul.f32 %v1037, %v1038
    %v1041 = vperm.slane %v122, 7
    %v1042 = vadd.f32 %v1039, %v1041
    %v1043 = vadd.f32 %v1040, %v1041
    %s1044 = scalar_lea.vmem [#allocation7], 48
    %v1045 = vld [vmem:[%s1044] sm:$0xff]
    %v1046 = vld [vmem:[%s1044 + $0x8] sm:$0xf]
    %v1047 = vld [vmem:[%s1044 + $0xc] sm:$0xff]
    %v1048 = vld [vmem:[%s1044 + $0x14] sm:$0xf]
    %v1049 = vld [vmem:[%s1044 + $0x18] sm:$0xff]
    %v1050 = vld [vmem:[%s1044 + $0x20] sm:$0xf]
    %v1051 = vld [vmem:[%s1044 + $0x24] sm:$0xff]
    %v1052 = vld [vmem:[%s1044 + $0x2c] sm:$0xf]
    %s1053 = scalar_lea.vmem [#allocation8], 16
    %v1054 = vld [vmem:[%s1053] sm:$0xf]
    %v1055 = vld [vmem:[%s1053 + $0x4] sm:$0xf]
    %v1056 = vld [vmem:[%s1053 + $0x8] sm:$0xf]
    %v1057 = vld [vmem:[%s1053 + $0xc] sm:$0xf]
    %s1058 = scalar_lea.vmem [#allocation10], 8
    %v1059 = vld [vmem:[%s1058] sm:$0xff]
    %v1060 = vpack.c.bf16 %v1043, %v1042
    %v1061 = vperm.slane %v1059, 0
    %v1066 = vunpack.c.l.b16 %v1045
    %v1067 = vunpack.c.l.b16 %v1047
    %v1068 = vunpack.c.l.b16 %v1049
    %v1069 = vunpack.c.l.b16 %v1051
    %v1070 = vpack.c.b16 %v1067, %v1066
    %v1071 = vpack.c.b16 %v1069, %v1068
    %v1075 = vsel %vm137, %v1060, 0
    %1077 = vmatpush.bf16.msra.mxu0 0
    %1078 = vmatpush.bf16.msra.mxu0 0
    %1079 = vmatpush.bf16.msra.mxu0 0
    %1080 = vmatpush.bf16.msra.mxu0 0
    %1081 = vmatpush.bf16.msra.mxu0 0
    %1082 = vmatpush.bf16.msra.mxu0 0
    %1083 = vmatpush.bf16.msra.mxu0 %v1071
    %1084 = vmatpush.bf16.msra.mxu0 %v1070
    %1085 = vmatmul.bf16.gmra.mxu0 %v1075
    %v1086 = vpop.f32.mrf.mxu0
    %v1087 = vadd.f32 %v1061, %v1086
    %v1088 = vpop.f32.mrf.mxu0
    %v1089 = vadd.f32 %v1061, %v1088
    %1090 = vdwg.mxu0
    %1092 = vrot.lane.b32.xlu0 %v1087, 120
    %v1093 = vpop.permute.xlu0 %1092
    %1096 = vrot.lane.b32.xlu0 %v1089, 120
    %v1097 = vpop.permute.xlu0 %1096
    %1099 = vrot.lane.b32.xlu0 %v1087, 112
    %v1100 = vpop.permute.xlu0 %1099
    %1102 = vrot.lane.b32.xlu0 %v1089, 112
    %v1103 = vpop.permute.xlu0 %1102
    %1105 = vrot.lane.b32.xlu0 %v1087, 104
    %v1106 = vpop.permute.xlu0 %1105
    %1108 = vrot.lane.b32.xlu0 %v1089, 104
    %v1109 = vpop.permute.xlu0 %1108
    %v1111 = vpack.c.bf16 %v1087, %v1087
    %v1112 = vpack.c.bf16 %v1089, %v1089
    %v1113 = vpack.c.bf16 %v1093, %v1093
    %v1114 = vpack.c.bf16 %v1097, %v1097
    %v1115 = vpack.c.bf16 %v1100, %v1100
    %v1116 = vpack.c.bf16 %v1103, %v1103
    %v1117 = vpack.c.bf16 %v1106, %v1106
    %v1118 = vpack.c.bf16 %v1109, %v1109
    %v1120 = vunpack.c.l.b16 %v1111
    %v1121 = vpack.c.b16 %v1120, %v1120
    %1122 = vrot.lane.b32.xlu0 %v1121, 96
    %v1123 = vpop.permute.xlu0 %1122
    %v1125 = vsel %vm188, %v1111, 0
    %v1128 = vsel %vm188, %v1123, 0
    %1130 = vmatpush.bf16.xpose.msra.mxu0 0
    %1131 = vmatpush.bf16.xpose.msra.mxu0 0
    %1132 = vmatpush.bf16.xpose.msra.mxu0 0
    %1133 = vmatpush.bf16.xpose.msra.mxu0 0
    %1134 = vmatpush.bf16.xpose.msra.mxu0 0
    %1135 = vmatpush.bf16.xpose.msra.mxu0 0
    %1136 = vmatpush.bf16.xpose.msra.mxu0 0
    %1137 = vmatpush.bf16.xpose.msra.mxu0 %v1128
    %1138 = vmatmul.bf16.gmra.mxu0 %v1125
    %v1139 = vpop.f32.mrf.mxu0
    %v1140 = vadd.f32 0.0, %v1139
    %v1141 = vpop.f32.mrf.mxu0
    %1142 = vdwg.mxu0
    %v1144 = vunpack.c.l.b16 %v1112
    %v1145 = vpack.c.b16 %v1144, %v1144
    %1146 = vrot.lane.b32.xlu0 %v1145, 96
    %v1147 = vpop.permute.xlu0 %1146
    %v1149 = vsel %vm188, %v1112, 0
    %v1152 = vsel %vm188, %v1147, 0
    %1154 = vmatpush.bf16.xpose.msra.mxu0 0
    %1155 = vmatpush.bf16.xpose.msra.mxu0 0
    %1156 = vmatpush.bf16.xpose.msra.mxu0 0
    %1157 = vmatpush.bf16.xpose.msra.mxu0 0
    %1158 = vmatpush.bf16.xpose.msra.mxu0 0
    %1159 = vmatpush.bf16.xpose.msra.mxu0 0
    %1160 = vmatpush.bf16.xpose.msra.mxu0 0
    %1161 = vmatpush.bf16.xpose.msra.mxu0 %v1152
    %1162 = vmatmul.bf16.gmra.mxu0 %v1149
    %v1163 = vpop.f32.mrf.mxu0
    %v1164 = vadd.f32 0.0, %v1163
    %v1165 = vpop.f32.mrf.mxu0
    %1166 = vdwg.mxu0
    %v1168 = vunpack.c.l.b16 %v1113
    %v1169 = vpack.c.b16 %v1168, %v1168
    %1170 = vrot.lane.b32.xlu0 %v1169, 96
    %v1171 = vpop.permute.xlu0 %1170
    %v1173 = vsel %vm188, %v1113, 0
    %v1176 = vsel %vm188, %v1171, 0
    %1178 = vmatpush.bf16.xpose.msra.mxu0 0
    %1179 = vmatpush.bf16.xpose.msra.mxu0 0
    %1180 = vmatpush.bf16.xpose.msra.mxu0 0
    %1181 = vmatpush.bf16.xpose.msra.mxu0 0
    %1182 = vmatpush.bf16.xpose.msra.mxu0 0
    %1183 = vmatpush.bf16.xpose.msra.mxu0 0
    %1184 = vmatpush.bf16.xpose.msra.mxu0 0
    %1185 = vmatpush.bf16.xpose.msra.mxu0 %v1176
    %1186 = vmatmul.bf16.gmra.mxu0 %v1173
    %v1187 = vpop.f32.mrf.mxu0
    %v1188 = vadd.f32 0.0, %v1187
    %v1189 = vpop.f32.mrf.mxu0
    %1190 = vdwg.mxu0
    %v1192 = vunpack.c.l.b16 %v1114
    %v1193 = vpack.c.b16 %v1192, %v1192
    %1194 = vrot.lane.b32.xlu0 %v1193, 96
    %v1195 = vpop.permute.xlu0 %1194
    %v1197 = vsel %vm188, %v1114, 0
    %v1200 = vsel %vm188, %v1195, 0
    %1202 = vmatpush.bf16.xpose.msra.mxu0 0
    %1203 = vmatpush.bf16.xpose.msra.mxu0 0
    %1204 = vmatpush.bf16.xpose.msra.mxu0 0
    %1205 = vmatpush.bf16.xpose.msra.mxu0 0
    %1206 = vmatpush.bf16.xpose.msra.mxu0 0
    %1207 = vmatpush.bf16.xpose.msra.mxu0 0
    %1208 = vmatpush.bf16.xpose.msra.mxu0 0
    %1209 = vmatpush.bf16.xpose.msra.mxu0 %v1200
    %1210 = vmatmul.bf16.gmra.mxu0 %v1197
    %v1211 = vpop.f32.mrf.mxu0
    %v1212 = vadd.f32 0.0, %v1211
    %v1213 = vpop.f32.mrf.mxu0
    %1214 = vdwg.mxu0
    %v1216 = vunpack.c.l.b16 %v1115
    %v1217 = vpack.c.b16 %v1216, %v1216
    %1218 = vrot.lane.b32.xlu0 %v1217, 96
    %v1219 = vpop.permute.xlu0 %1218
    %v1221 = vsel %vm188, %v1115, 0
    %v1224 = vsel %vm188, %v1219, 0
    %1226 = vmatpush.bf16.xpose.msra.mxu0 0
    %1227 = vmatpush.bf16.xpose.msra.mxu0 0
    %1228 = vmatpush.bf16.xpose.msra.mxu0 0
    %1229 = vmatpush.bf16.xpose.msra.mxu0 0
    %1230 = vmatpush.bf16.xpose.msra.mxu0 0
    %1231 = vmatpush.bf16.xpose.msra.mxu0 0
    %1232 = vmatpush.bf16.xpose.msra.mxu0 0
    %1233 = vmatpush.bf16.xpose.msra.mxu0 %v1224
    %1234 = vmatmul.bf16.gmra.mxu0 %v1221
    %v1235 = vpop.f32.mrf.mxu0
    %v1236 = vadd.f32 0.0, %v1235
    %v1237 = vpop.f32.mrf.mxu0
    %1238 = vdwg.mxu0
    %v1240 = vunpack.c.l.b16 %v1116
    %v1241 = vpack.c.b16 %v1240, %v1240
    %1242 = vrot.lane.b32.xlu0 %v1241, 96
    %v1243 = vpop.permute.xlu0 %1242
    %v1245 = vsel %vm188, %v1116, 0
    %v1248 = vsel %vm188, %v1243, 0
    %1250 = vmatpush.bf16.xpose.msra.mxu0 0
    %1251 = vmatpush.bf16.xpose.msra.mxu0 0
    %1252 = vmatpush.bf16.xpose.msra.mxu0 0
    %1253 = vmatpush.bf16.xpose.msra.mxu0 0
    %1254 = vmatpush.bf16.xpose.msra.mxu0 0
    %1255 = vmatpush.bf16.xpose.msra.mxu0 0
    %1256 = vmatpush.bf16.xpose.msra.mxu0 0
    %1257 = vmatpush.bf16.xpose.msra.mxu0 %v1248
    %1258 = vmatmul.bf16.gmra.mxu0 %v1245
    %v1259 = vpop.f32.mrf.mxu0
    %v1260 = vadd.f32 0.0, %v1259
    %v1261 = vpop.f32.mrf.mxu0
    %1262 = vdwg.mxu0
    %v1264 = vunpack.c.l.b16 %v1117
    %v1265 = vpack.c.b16 %v1264, %v1264
    %1266 = vrot.lane.b32.xlu0 %v1265, 96
    %v1267 = vpop.permute.xlu0 %1266
    %v1269 = vsel %vm188, %v1117, 0
    %v1272 = vsel %vm188, %v1267, 0
    %1274 = vmatpush.bf16.xpose.msra.mxu0 0
    %1275 = vmatpush.bf16.xpose.msra.mxu0 0
    %1276 = vmatpush.bf16.xpose.msra.mxu0 0
    %1277 = vmatpush.bf16.xpose.msra.mxu0 0
    %1278 = vmatpush.bf16.xpose.msra.mxu0 0
    %1279 = vmatpush.bf16.xpose.msra.mxu0 0
    %1280 = vmatpush.bf16.xpose.msra.mxu0 0
    %1281 = vmatpush.bf16.xpose.msra.mxu0 %v1272
    %1282 = vmatmul.bf16.gmra.mxu0 %v1269
    %v1283 = vpop.f32.mrf.mxu0
    %v1284 = vadd.f32 0.0, %v1283
    %v1285 = vpop.f32.mrf.mxu0
    %1286 = vdwg.mxu0
    %v1288 = vunpack.c.l.b16 %v1118
    %v1289 = vpack.c.b16 %v1288, %v1288
    %1290 = vrot.lane.b32.xlu0 %v1289, 96
    %v1291 = vpop.permute.xlu0 %1290
    %v1293 = vsel %vm188, %v1118, 0
    %v1296 = vsel %vm188, %v1291, 0
    %1298 = vmatpush.bf16.xpose.msra.mxu0 0
    %1299 = vmatpush.bf16.xpose.msra.mxu0 0
    %1300 = vmatpush.bf16.xpose.msra.mxu0 0
    %1301 = vmatpush.bf16.xpose.msra.mxu0 0
    %1302 = vmatpush.bf16.xpose.msra.mxu0 0
    %1303 = vmatpush.bf16.xpose.msra.mxu0 0
    %1304 = vmatpush.bf16.xpose.msra.mxu0 0
    %1305 = vmatpush.bf16.xpose.msra.mxu0 %v1296
    %1306 = vmatmul.bf16.gmra.mxu0 %v1293
    %v1307 = vpop.f32.mrf.mxu0
    %v1308 = vadd.f32 0.0, %v1307
    %v1309 = vpop.f32.mrf.mxu0
    %1310 = vdwg.mxu0
    %v1311 = vmul.f32 %v1140, 0.35355338
    %v1312 = vmul.f32 %v1164, 0.35355338
    %v1313 = vmul.f32 %v1188, 0.35355338
    %v1314 = vmul.f32 %v1212, 0.35355338
    %v1315 = vmul.f32 %v1236, 0.35355338
    %v1316 = vmul.f32 %v1260, 0.35355338
    %v1317 = vmul.f32 %v1284, 0.35355338
    %v1318 = vmul.f32 %v1308, 0.35355338
    %v1319 = vadd.f32 %v1311, %v102
    %v1320 = vadd.f32 %v1312, %v103
    %v1321 = vadd.f32 %v1313, %v104
    %v1322 = vadd.f32 %v1314, %v105
    %v1323 = vadd.f32 %v1315, %v106
    %v1324 = vadd.f32 %v1316, %v107
    %v1325 = vadd.f32 %v1317, %v108
    %v1326 = vadd.f32 %v1318, %v109
    %v1327 = vsel %vm188, %v1319, -inf
    %1328 = vmax.xlane.f32.xlu0 %v1327
    %v1329 = vpop.xlane.xlu0 %1328
    %v1330 = vsel %vm188, %v1320, -inf
    %1331 = vmax.xlane.f32.xlu0 %v1330
    %v1332 = vpop.xlane.xlu0 %1331
    %v1333 = vsel %vm188, %v1321, -inf
    %1334 = vmax.xlane.f32.xlu0 %v1333
    %v1335 = vpop.xlane.xlu0 %1334
    %v1336 = vsel %vm188, %v1322, -inf
    %1337 = vmax.xlane.f32.xlu0 %v1336
    %v1338 = vpop.xlane.xlu0 %1337
    %v1339 = vsel %vm188, %v1323, -inf
    %1340 = vmax.xlane.f32.xlu0 %v1339
    %v1341 = vpop.xlane.xlu0 %1340
    %v1342 = vsel %vm188, %v1324, -inf
    %1343 = vmax.xlane.f32.xlu0 %v1342
    %v1344 = vpop.xlane.xlu0 %1343
    %v1345 = vsel %vm188, %v1325, -inf
    %1346 = vmax.xlane.f32.xlu0 %v1345
    %v1347 = vpop.xlane.xlu0 %1346
    %v1348 = vsel %vm188, %v1326, -inf
    %1349 = vmax.xlane.f32.xlu0 %v1348
    %v1350 = vpop.xlane.xlu0 %1349
    %v1351 = vsub.f32 %v1319, %v1329
    %v1352 = vsub.f32 %v1320, %v1332
    %v1353 = vsub.f32 %v1321, %v1335
    %v1354 = vsub.f32 %v1322, %v1338
    %v1355 = vsub.f32 %v1323, %v1341
    %v1356 = vsub.f32 %v1324, %v1344
    %v1357 = vsub.f32 %v1325, %v1347
    %v1358 = vsub.f32 %v1326, %v1350
    %v1359 = vmul.f32 %v1351, 1.442695
    %v1360 = vpow.pop %v1359
    %v1361 = vmul.f32 %v1352, 1.442695
    %v1362 = vpow.pop %v1361
    %v1363 = vmul.f32 %v1353, 1.442695
    %v1364 = vpow.pop %v1363
    %v1365 = vmul.f32 %v1354, 1.442695
    %v1366 = vpow.pop %v1365
    %v1367 = vmul.f32 %v1355, 1.442695
    %v1368 = vpow.pop %v1367
    %v1369 = vmul.f32 %v1356, 1.442695
    %v1370 = vpow.pop %v1369
    %v1371 = vmul.f32 %v1357, 1.442695
    %v1372 = vpow.pop %v1371
    %v1373 = vmul.f32 %v1358, 1.442695
    %v1374 = vpow.pop %v1373
    %v1375 = vsel %vm188, %v1360, 0.0
    %1376 = vadd.xlane.f32.xlu0 %v1375
    %v1377 = vpop.xlane.xlu0 %1376
    %v1378 = vsel %vm188, %v1362, 0.0
    %1379 = vadd.xlane.f32.xlu0 %v1378
    %v1380 = vpop.xlane.xlu0 %1379
    %v1381 = vsel %vm188, %v1364, 0.0
    %1382 = vadd.xlane.f32.xlu0 %v1381
    %v1383 = vpop.xlane.xlu0 %1382
    %v1384 = vsel %vm188, %v1366, 0.0
    %1385 = vadd.xlane.f32.xlu0 %v1384
    %v1386 = vpop.xlane.xlu0 %1385
    %v1387 = vsel %vm188, %v1368, 0.0
    %1388 = vadd.xlane.f32.xlu0 %v1387
    %v1389 = vpop.xlane.xlu0 %1388
    %v1390 = vsel %vm188, %v1370, 0.0
    %1391 = vadd.xlane.f32.xlu0 %v1390
    %v1392 = vpop.xlane.xlu0 %1391
    %v1393 = vsel %vm188, %v1372, 0.0
    %1394 = vadd.xlane.f32.xlu0 %v1393
    %v1395 = vpop.xlane.xlu0 %1394
    %v1396 = vsel %vm188, %v1374, 0.0
    %1397 = vadd.xlane.f32.xlu0 %v1396
    %v1398 = vpop.xlane.xlu0 %1397
    %v1399 = vrcp.pop %v1377
    %v1400 = vrcp.pop %v1380
    %v1401 = vrcp.pop %v1383
    %v1402 = vrcp.pop %v1386
    %v1403 = vrcp.pop %v1389
    %v1404 = vrcp.pop %v1392
    %v1405 = vrcp.pop %v1395
    %v1406 = vrcp.pop %v1398
    %v1407 = vmul.f32 %v1360, %v1399
    %v1408 = vmul.f32 %v1362, %v1400
    %v1409 = vmul.f32 %v1364, %v1401
    %v1410 = vmul.f32 %v1366, %v1402
    %v1411 = vmul.f32 %v1368, %v1403
    %v1412 = vmul.f32 %v1370, %v1404
    %v1413 = vmul.f32 %v1372, %v1405
    %v1414 = vmul.f32 %v1374, %v1406
    %v1415 = vpack.c.bf16 %v1407, %v1407
    %v1416 = vpack.c.bf16 %v1408, %v1408
    %v1417 = vpack.c.bf16 %v1409, %v1409
    %v1418 = vpack.c.bf16 %v1410, %v1410
    %v1419 = vpack.c.bf16 %v1411, %v1411
    %v1420 = vpack.c.bf16 %v1412, %v1412
    %v1421 = vpack.c.bf16 %v1413, %v1413
    %v1422 = vpack.c.bf16 %v1414, %v1414
    %1423 = vrot.lane.b32.xlu0 %v1121, 64
    %v1424 = vpop.permute.xlu0 %1423
    %v1426 = vsel %vm188, %v1415, 0
    %v1429 = vsel %vm493, %v1424, 0
    %1431 = vmatpush.bf16.msra.mxu0 0
    %1432 = vmatpush.bf16.msra.mxu0 0
    %1433 = vmatpush.bf16.msra.mxu0 0
    %1434 = vmatpush.bf16.msra.mxu0 0
    %1435 = vmatpush.bf16.msra.mxu0 0
    %1436 = vmatpush.bf16.msra.mxu0 0
    %1437 = vmatpush.bf16.msra.mxu0 0
    %1438 = vmatpush.bf16.msra.mxu0 %v1429
    %1439 = vmatmul.bf16.gmra.mxu0 %v1426
    %v1440 = vpop.f32.mrf.mxu0
    %v1441 = vadd.f32 0.0, %v1440
    %v1442 = vpop.f32.mrf.mxu0
    %1443 = vdwg.mxu0
    %1444 = vrot.lane.b32.xlu0 %v1145, 64
    %v1445 = vpop.permute.xlu0 %1444
    %v1447 = vsel %vm188, %v1416, 0
    %v1450 = vsel %vm493, %v1445, 0
    %1452 = vmatpush.bf16.msra.mxu0 0
    %1453 = vmatpush.bf16.msra.mxu0 0
    %1454 = vmatpush.bf16.msra.mxu0 0
    %1455 = vmatpush.bf16.msra.mxu0 0
    %1456 = vmatpush.bf16.msra.mxu0 0
    %1457 = vmatpush.bf16.msra.mxu0 0
    %1458 = vmatpush.bf16.msra.mxu0 0
    %1459 = vmatpush.bf16.msra.mxu0 %v1450
    %1460 = vmatmul.bf16.gmra.mxu0 %v1447
    %v1461 = vpop.f32.mrf.mxu0
    %v1462 = vadd.f32 0.0, %v1461
    %v1463 = vpop.f32.mrf.mxu0
    %1464 = vdwg.mxu0
    %1465 = vrot.lane.b32.xlu0 %v1169, 64
    %v1466 = vpop.permute.xlu0 %1465
    %v1468 = vsel %vm188, %v1417, 0
    %v1471 = vsel %vm493, %v1466, 0
    %1473 = vmatpush.bf16.msra.mxu0 0
    %1474 = vmatpush.bf16.msra.mxu0 0
    %1475 = vmatpush.bf16.msra.mxu0 0
    %1476 = vmatpush.bf16.msra.mxu0 0
    %1477 = vmatpush.bf16.msra.mxu0 0
    %1478 = vmatpush.bf16.msra.mxu0 0
    %1479 = vmatpush.bf16.msra.mxu0 0
    %1480 = vmatpush.bf16.msra.mxu0 %v1471
    %1481 = vmatmul.bf16.gmra.mxu0 %v1468
    %v1482 = vpop.f32.mrf.mxu0
    %v1483 = vadd.f32 0.0, %v1482
    %v1484 = vpop.f32.mrf.mxu0
    %1485 = vdwg.mxu0
    %1486 = vrot.lane.b32.xlu0 %v1193, 64
    %v1487 = vpop.permute.xlu0 %1486
    %v1489 = vsel %vm188, %v1418, 0
    %v1492 = vsel %vm493, %v1487, 0
    %1494 = vmatpush.bf16.msra.mxu0 0
    %1495 = vmatpush.bf16.msra.mxu0 0
    %1496 = vmatpush.bf16.msra.mxu0 0
    %1497 = vmatpush.bf16.msra.mxu0 0
    %1498 = vmatpush.bf16.msra.mxu0 0
    %1499 = vmatpush.bf16.msra.mxu0 0
    %1500 = vmatpush.bf16.msra.mxu0 0
    %1501 = vmatpush.bf16.msra.mxu0 %v1492
    %1502 = vmatmul.bf16.gmra.mxu0 %v1489
    %v1503 = vpop.f32.mrf.mxu0
    %v1504 = vadd.f32 0.0, %v1503
    %v1505 = vpop.f32.mrf.mxu0
    %1506 = vdwg.mxu0
    %1507 = vrot.lane.b32.xlu0 %v1217, 64
    %v1508 = vpop.permute.xlu0 %1507
    %v1510 = vsel %vm188, %v1419, 0
    %v1513 = vsel %vm493, %v1508, 0
    %1515 = vmatpush.bf16.msra.mxu0 0
    %1516 = vmatpush.bf16.msra.mxu0 0
    %1517 = vmatpush.bf16.msra.mxu0 0
    %1518 = vmatpush.bf16.msra.mxu0 0
    %1519 = vmatpush.bf16.msra.mxu0 0
    %1520 = vmatpush.bf16.msra.mxu0 0
    %1521 = vmatpush.bf16.msra.mxu0 0
    %1522 = vmatpush.bf16.msra.mxu0 %v1513
    %1523 = vmatmul.bf16.gmra.mxu0 %v1510
    %v1524 = vpop.f32.mrf.mxu0
    %v1525 = vadd.f32 0.0, %v1524
    %v1526 = vpop.f32.mrf.mxu0
    %1527 = vdwg.mxu0
    %1528 = vrot.lane.b32.xlu0 %v1241, 64
    %v1529 = vpop.permute.xlu0 %1528
    %v1531 = vsel %vm188, %v1420, 0
    %v1534 = vsel %vm493, %v1529, 0
    %1536 = vmatpush.bf16.msra.mxu0 0
    %1537 = vmatpush.bf16.msra.mxu0 0
    %1538 = vmatpush.bf16.msra.mxu0 0
    %1539 = vmatpush.bf16.msra.mxu0 0
    %1540 = vmatpush.bf16.msra.mxu0 0
    %1541 = vmatpush.bf16.msra.mxu0 0
    %1542 = vmatpush.bf16.msra.mxu0 0
    %1543 = vmatpush.bf16.msra.mxu0 %v1534
    %1544 = vmatmul.bf16.gmra.mxu0 %v1531
    %v1545 = vpop.f32.mrf.mxu0
    %v1546 = vadd.f32 0.0, %v1545
    %v1547 = vpop.f32.mrf.mxu0
    %1548 = vdwg.mxu0
    %1549 = vrot.lane.b32.xlu0 %v1265, 64
    %v1550 = vpop.permute.xlu0 %1549
    %v1552 = vsel %vm188, %v1421, 0
    %v1555 = vsel %vm493, %v1550, 0
    %1557 = vmatpush.bf16.msra.mxu0 0
    %1558 = vmatpush.bf16.msra.mxu0 0
    %1559 = vmatpush.bf16.msra.mxu0 0
    %1560 = vmatpush.bf16.msra.mxu0 0
    %1561 = vmatpush.bf16.msra.mxu0 0
    %1562 = vmatpush.bf16.msra.mxu0 0
    %1563 = vmatpush.bf16.msra.mxu0 0
    %1564 = vmatpush.bf16.msra.mxu0 %v1555
    %1565 = vmatmul.bf16.gmra.mxu0 %v1552
    %v1566 = vpop.f32.mrf.mxu0
    %v1567 = vadd.f32 0.0, %v1566
    %v1568 = vpop.f32.mrf.mxu0
    %1569 = vdwg.mxu0
    %1570 = vrot.lane.b32.xlu0 %v1289, 64
    %v1571 = vpop.permute.xlu0 %1570
    %v1573 = vsel %vm188, %v1422, 0
    %v1576 = vsel %vm493, %v1571, 0
    %1578 = vmatpush.bf16.msra.mxu0 0
    %1579 = vmatpush.bf16.msra.mxu0 0
    %1580 = vmatpush.bf16.msra.mxu0 0
    %1581 = vmatpush.bf16.msra.mxu0 0
    %1582 = vmatpush.bf16.msra.mxu0 0
    %1583 = vmatpush.bf16.msra.mxu0 0
    %1584 = vmatpush.bf16.msra.mxu0 0
    %1585 = vmatpush.bf16.msra.mxu0 %v1576
    %1586 = vmatmul.bf16.gmra.mxu0 %v1573
    %v1587 = vpop.f32.mrf.mxu0
    %v1588 = vadd.f32 0.0, %v1587
    %v1589 = vpop.f32.mrf.mxu0
    %1590 = vdwg.mxu0
    %v1591 = vpack.c.bf16 %v1441, %v1441
    %v1592 = vpack.c.bf16 %v1462, %v1462
    %v1593 = vpack.c.bf16 %v1483, %v1483
    %v1594 = vpack.c.bf16 %v1504, %v1504
    %v1595 = vpack.c.bf16 %v1525, %v1525
    %v1596 = vpack.c.bf16 %v1546, %v1546
    %v1597 = vpack.c.bf16 %v1567, %v1567
    %v1598 = vpack.c.bf16 %v1588, %v1588
    %v1601 = vunpack.c.l.b16 %v1591
    %v1602 = vunpack.c.l.b16 %v1592
    %v1603 = vpack.c.b16 %v1602, %v1601
    %v1605 = vsel %vm188, %v1603, 0
    %v1608 = vsel %vm493, %v1054, 0
    %1610 = vmatpush.bf16.msra.mxu0 0
    %1611 = vmatpush.bf16.msra.mxu0 0
    %1612 = vmatpush.bf16.msra.mxu0 0
    %1613 = vmatpush.bf16.msra.mxu0 0
    %1614 = vmatpush.bf16.msra.mxu0 0
    %1615 = vmatpush.bf16.msra.mxu0 0
    %1616 = vmatpush.bf16.msra.mxu0 0
    %1617 = vmatpush.bf16.msra.mxu0 %v1608
    %1618 = vmatmul.bf16.gmra.mxu0 %v1605
    %v1619 = vpop.f32.mrf.mxu0
    %v1620 = vadd.f32 0.0, %v1619
    %v1621 = vpop.f32.mrf.mxu0
    %v1622 = vadd.f32 0.0, %v1621
    %1623 = vdwg.mxu0
    %v1626 = vunpack.c.l.b16 %v1593
    %v1627 = vunpack.c.l.b16 %v1594
    %v1628 = vpack.c.b16 %v1627, %v1626
    %v1630 = vsel %vm188, %v1628, 0
    %v1633 = vsel %vm493, %v1055, 0
    %1635 = vmatpush.bf16.msra.mxu0 0
    %1636 = vmatpush.bf16.msra.mxu0 0
    %1637 = vmatpush.bf16.msra.mxu0 0
    %1638 = vmatpush.bf16.msra.mxu0 0
    %1639 = vmatpush.bf16.msra.mxu0 0
    %1640 = vmatpush.bf16.msra.mxu0 0
    %1641 = vmatpush.bf16.msra.mxu0 0
    %1642 = vmatpush.bf16.msra.mxu0 %v1633
    %1643 = vmatmul.bf16.gmra.mxu0 %v1630
    %v1644 = vpop.f32.mrf.mxu0
    %v1645 = vadd.f32 0.0, %v1644
    %v1646 = vpop.f32.mrf.mxu0
    %v1647 = vadd.f32 0.0, %v1646
    %1648 = vdwg.mxu0
    %v1651 = vunpack.c.l.b16 %v1595
    %v1652 = vunpack.c.l.b16 %v1596
    %v1653 = vpack.c.b16 %v1652, %v1651
    %v1655 = vsel %vm188, %v1653, 0
    %v1658 = vsel %vm493, %v1056, 0
    %1660 = vmatpush.bf16.msra.mxu0 0
    %1661 = vmatpush.bf16.msra.mxu0 0
    %1662 = vmatpush.bf16.msra.mxu0 0
    %1663 = vmatpush.bf16.msra.mxu0 0
    %1664 = vmatpush.bf16.msra.mxu0 0
    %1665 = vmatpush.bf16.msra.mxu0 0
    %1666 = vmatpush.bf16.msra.mxu0 0
    %1667 = vmatpush.bf16.msra.mxu0 %v1658
    %1668 = vmatmul.bf16.gmra.mxu0 %v1655
    %v1669 = vpop.f32.mrf.mxu0
    %v1670 = vadd.f32 0.0, %v1669
    %v1671 = vpop.f32.mrf.mxu0
    %v1672 = vadd.f32 0.0, %v1671
    %1673 = vdwg.mxu0
    %v1676 = vunpack.c.l.b16 %v1597
    %v1677 = vunpack.c.l.b16 %v1598
    %v1678 = vpack.c.b16 %v1677, %v1676
    %v1680 = vsel %vm188, %v1678, 0
    %v1683 = vsel %vm493, %v1057, 0
    %1685 = vmatpush.bf16.msra.mxu0 0
    %1686 = vmatpush.bf16.msra.mxu0 0
    %1687 = vmatpush.bf16.msra.mxu0 0
    %1688 = vmatpush.bf16.msra.mxu0 0
    %1689 = vmatpush.bf16.msra.mxu0 0
    %1690 = vmatpush.bf16.msra.mxu0 0
    %1691 = vmatpush.bf16.msra.mxu0 0
    %1692 = vmatpush.bf16.msra.mxu0 %v1683
    %1693 = vmatmul.bf16.gmra.mxu0 %v1680
    %v1694 = vpop.f32.mrf.mxu0
    %v1695 = vadd.f32 0.0, %v1694
    %v1696 = vpop.f32.mrf.mxu0
    %v1697 = vadd.f32 0.0, %v1696
    %1698 = vdwg.mxu0
    %v1699 = vsel %vm137, %v1620, 0.0
    %v1700 = vsel %vm137, %v1645, 0.0
    %v1701 = vadd.f32 %v1699, %v1700
    %v1702 = vsel %vm137, %v1670, 0.0
    %v1703 = vadd.f32 %v1701, %v1702
    %v1704 = vsel %vm137, %v1695, 0.0
    %v1705 = vadd.f32 %v1703, %v1704
    %v1706 = vsel %vm137, %v1622, 0.0
    %v1707 = vsel %vm137, %v1647, 0.0
    %v1708 = vadd.f32 %v1706, %v1707
    %v1709 = vsel %vm137, %v1672, 0.0
    %v1710 = vadd.f32 %v1708, %v1709
    %v1711 = vsel %vm137, %v1697, 0.0
    %v1712 = vadd.f32 %v1710, %v1711
    %v1713 = vperm.slane %v1059, 1
    %v1714 = vadd.f32 %v1705, %v1713
    %v1715 = vadd.f32 %v1712, %v1713
    %v1716 = vadd.f32 %v1714, %v1042
    %v1717 = vadd.f32 %v1715, %v1043
    %v1718 = vsel %vm137, %v1716, 0.0
    %1719 = vadd.xlane.f32.xlu0 %v1718
    %v1720 = vpop.xlane.xlu0 %1719
    %v1721 = vsel %vm137, %v1717, 0.0
    %1722 = vadd.xlane.f32.xlu0 %v1721
    %v1723 = vpop.xlane.xlu0 %1722
    %v1724 = vmul.f32 %v1720, %v796
    %v1725 = vmul.f32 %v1723, %v796
    %v1726 = vsub.f32 %v1716, %v1724
    %v1727 = vsub.f32 %v1717, %v1725
    %v1728 = vmul.f32 %v1726, %v1726
    %v1729 = vmul.f32 %v1727, %v1727
    %v1730 = vsel %vm137, %v1728, 0.0
    %1731 = vadd.xlane.f32.xlu0 %v1730
    %v1732 = vpop.xlane.xlu0 %1731
    %v1733 = vsel %vm137, %v1729, 0.0
    %1734 = vadd.xlane.f32.xlu0 %v1733
    %v1735 = vpop.xlane.xlu0 %1734
    %v1736 = vmul.f32 %v1732, %v796
    %v1737 = vmul.f32 %v1735, %v796
    %v1738 = vadd.f32 %v1736, 1e-12
    %v1739 = vadd.f32 %v1737, 1e-12
    %v1740 = vrsqrt.pop %v1738
    %v1741 = vmul.f32 %v1740, %v1738
    %v1742 = vmul.f32 %v1741, %v1740
    %v1743 = vmul.f32 0.5, %v1742
    %v1744 = vsub.f32 1.5, %v1743
    %v1745 = vmul.f32 %v1740, %v1744
    %vm1746 = vweird.f32 %v1738
    %vm1747 = vweird.f32 %v1740
    %vm1748 = vmor %vm1746, %vm1747
    %v1749 = vsel %vm1748, %v1740, %v1745
    %v1750 = vrsqrt.pop %v1739
    %v1751 = vmul.f32 %v1750, %v1739
    %v1752 = vmul.f32 %v1751, %v1750
    %v1753 = vmul.f32 0.5, %v1752
    %v1754 = vsub.f32 1.5, %v1753
    %v1755 = vmul.f32 %v1750, %v1754
    %vm1756 = vweird.f32 %v1739
    %vm1757 = vweird.f32 %v1750
    %vm1758 = vmor %vm1756, %vm1757
    %v1759 = vsel %vm1758, %v1750, %v1755
    %v1760 = vmul.f32 %v1726, %v1749
    %v1761 = vmul.f32 %v1727, %v1759
    %v1762 = vperm.slane %v1059, 2
    %v1763 = vmul.f32 %v1760, %v1762
    %v1764 = vmul.f32 %v1761, %v1762
    %v1765 = vperm.slane %v1059, 3
    %v1766 = vadd.f32 %v1763, %v1765
    %v1767 = vadd.f32 %v1764, %v1765
    %v1768 = vpack.c.bf16 %v1767, %v1766
    %v1769 = vperm.slane %v1059, 4
    %v1770 = vunpack.c.h.b16 %v1045
    %v1771 = vunpack.c.h.b16 %v1047
    %v1772 = vunpack.c.h.b16 %v1049
    %v1773 = vunpack.c.h.b16 %v1051
    %v1774 = vpack.c.b16 %v1771, %v1770
    %v1775 = vpack.c.b16 %v1773, %v1772
    %v1779 = vsel %vm137, %v1768, 0
    %1781 = vmatpush.bf16.msra.mxu0 0
    %1782 = vmatpush.bf16.msra.mxu0 0
    %1783 = vmatpush.bf16.msra.mxu0 0
    %1784 = vmatpush.bf16.msra.mxu0 0
    %1785 = vmatpush.bf16.msra.mxu0 0
    %1786 = vmatpush.bf16.msra.mxu0 0
    %1787 = vmatpush.bf16.msra.mxu0 %v1775
    %1788 = vmatpush.bf16.msra.mxu0 %v1774
    %1789 = vmatmul.bf16.gmra.mxu0 %v1779
    %v1790 = vpop.f32.mrf.mxu0
    %v1791 = vadd.f32 %v1769, %v1790
    %v1792 = vpop.f32.mrf.mxu0
    %v1793 = vadd.f32 %v1769, %v1792
    %1794 = vdwg.mxu0
    %v1795 = vmul.f32 %v1791, 0.5
    %v1796 = vmul.f32 %v1793, 0.5
    %v1797 = vmul.f32 %v1791, 0.70710677
    %v1798 = vmul.f32 %v1793, 0.70710677
    %v1799 = vmul.f32 %v1797, %v1797
    %v1800 = vmin.f32 16.0, %v1799
    %v1801 = vmul.f32 %v1800, 2.1237322e-06
    %v1802 = vadd.f32 %v1801, 0.00028619796
    %v1803 = vmul.f32 %v1800, %v1802
    %v1804 = vadd.f32 %v1803, 0.0036580483
    %v1805 = vmul.f32 %v1800, %v1804
    %v1806 = vadd.f32 %v1805, 0.05243302
    %v1807 = vmul.f32 %v1800, %v1806
    %v1808 = vadd.f32 %v1807, 0.18741608
    %v1809 = vmul.f32 %v1800, %v1808
    %v1810 = vadd.f32 %v1809, 1.1283791
    %v1811 = vmul.f32 %v1797, %v1810
    %v1812 = vmul.f32 %v1800, 3.8918573e-05
    %v1813 = vadd.f32 %v1812, 0.001143296
    %v1814 = vmul.f32 %v1800, %v1813
    %v1815 = vadd.f32 %v1814, 0.014752088
    %v1816 = vmul.f32 %v1800, %v1815
    %v1817 = vadd.f32 %v1816, 0.112945676
    %v1818 = vmul.f32 %v1800, %v1817
    %v1819 = vadd.f32 %v1818, 0.4994258
    %v1820 = vmul.f32 %v1800, %v1819
    %v1821 = vadd.f32 %v1820, 1.0
    %v1822 = vrcp.pop %v1821
    %v1823 = vmul.f32 %v1821, %v1822
    %v1824 = vsub.f32 1.0, %v1823
    %v1825 = vmul.f32 %v1822, %v1824
    %v1826 = vadd.f32 %v1822, %v1825
    %vm1827 = vweird.f32 %v1821
    %vm1828 = vweird.f32 %v1822
    %vm1829 = vmor %vm1827, %vm1828
    %v1830 = vsel %vm1829, %v1822, %v1826
    %v1831 = vand.u32 2147483647, %v1821
    %vm1832 = vcmp.eq.f32.partialorder %v1831, 8.507059e+37
    %v1833 = vand.u32 %v1821, 2147483648
    %v1834 = vor.u32 1.1754944e-38, %v1833
    %v1835 = vsel %vm1832, %v1834, %v1830
    %v1836 = vmul.f32 %v1811, %v1835
    %v1837 = vmin.f32 %v1836, 1.0
    %v1838 = vmax.f32 %v1837, -1.0
    %v1839 = vmul.f32 %v1798, %v1798
    %v1840 = vmin.f32 16.0, %v1839
    %v1841 = vmul.f32 %v1840, 2.1237322e-06
    %v1842 = vadd.f32 %v1841, 0.00028619796
    %v1843 = vmul.f32 %v1840, %v1842
    %v1844 = vadd.f32 %v1843, 0.0036580483
    %v1845 = vmul.f32 %v1840, %v1844
    %v1846 = vadd.f32 %v1845, 0.05243302
    %v1847 = vmul.f32 %v1840, %v1846
    %v1848 = vadd.f32 %v1847, 0.18741608
    %v1849 = vmul.f32 %v1840, %v1848
    %v1850 = vadd.f32 %v1849, 1.1283791
    %v1851 = vmul.f32 %v1798, %v1850
    %v1852 = vmul.f32 %v1840, 3.8918573e-05
    %v1853 = vadd.f32 %v1852, 0.001143296
    %v1854 = vmul.f32 %v1840, %v1853
    %v1855 = vadd.f32 %v1854, 0.014752088
    %v1856 = vmul.f32 %v1840, %v1855
    %v1857 = vadd.f32 %v1856, 0.112945676
    %v1858 = vmul.f32 %v1840, %v1857
    %v1859 = vadd.f32 %v1858, 0.4994258
    %v1860 = vmul.f32 %v1840, %v1859
    %v1861 = vadd.f32 %v1860, 1.0
    %v1862 = vrcp.pop %v1861
    %v1863 = vmul.f32 %v1861, %v1862
    %v1864 = vsub.f32 1.0, %v1863
    %v1865 = vmul.f32 %v1862, %v1864
    %v1866 = vadd.f32 %v1862, %v1865
    %vm1867 = vweird.f32 %v1861
    %vm1868 = vweird.f32 %v1862
    %vm1869 = vmor %vm1867, %vm1868
    %v1870 = vsel %vm1869, %v1862, %v1866
    %v1871 = vand.u32 2147483647, %v1861
    %vm1872 = vcmp.eq.f32.partialorder %v1871, 8.507059e+37
    %v1873 = vand.u32 %v1861, 2147483648
    %v1874 = vor.u32 1.1754944e-38, %v1873
    %v1875 = vsel %vm1872, %v1874, %v1870
    %v1876 = vmul.f32 %v1851, %v1875
    %v1877 = vmin.f32 %v1876, 1.0
    %v1878 = vmax.f32 %v1877, -1.0
    %v1879 = vadd.f32 %v1838, 1.0
    %v1880 = vadd.f32 %v1878, 1.0
    %v1881 = vmul.f32 %v1795, %v1879
    %v1882 = vmul.f32 %v1796, %v1880
    %v1883 = vpack.c.bf16 %v1882, %v1881
    %v1884 = vperm.slane %v1059, 5
    %v1889 = vunpack.c.l.b16 %v1046
    %v1890 = vunpack.c.l.b16 %v1048
    %v1891 = vunpack.c.l.b16 %v1050
    %v1892 = vunpack.c.l.b16 %v1052
    %v1893 = vpack.c.b16 %v1890, %v1889
    %v1894 = vpack.c.b16 %v1892, %v1891
    %v1896 = vsel %vm968, %v1883, 0
    %v1899 = vsel %vm968, %v1893, 0
    %v1902 = vsel %vm968, %v1894, 0
    %1904 = vmatpush.bf16.xpose.msra.mxu0 0
    %1905 = vmatpush.bf16.xpose.msra.mxu0 0
    %1906 = vmatpush.bf16.xpose.msra.mxu0 0
    %1907 = vmatpush.bf16.xpose.msra.mxu0 0
    %1908 = vmatpush.bf16.xpose.msra.mxu0 0
    %1909 = vmatpush.bf16.xpose.msra.mxu0 0
    %1910 = vmatpush.bf16.xpose.msra.mxu0 %v1902
    %1911 = vmatpush.bf16.xpose.msra.mxu0 %v1899
    %1912 = vmatmul.bf16.gmra.mxu0 %v1896
    %v1913 = vpop.f32.mrf.mxu0
    %v1914 = vadd.f32 %v1884, %v1913
    %v1915 = vpop.f32.mrf.mxu0
    %v1916 = vadd.f32 %v1884, %v1915
    %1917 = vdwg.mxu0
    %v1918 = vadd.f32 %v1914, %v1766
    %v1919 = vadd.f32 %v1916, %v1767
    %v1920 = vsel %vm137, %v1918, 0.0
    %1921 = vadd.xlane.f32.xlu0 %v1920
    %v1922 = vpop.xlane.xlu0 %1921
    %v1923 = vsel %vm137, %v1919, 0.0
    %1924 = vadd.xlane.f32.xlu0 %v1923
    %v1925 = vpop.xlane.xlu0 %1924
    %v1926 = vmul.f32 %v1922, %v796
    %v1927 = vmul.f32 %v1925, %v796
    %v1928 = vsub.f32 %v1918, %v1926
    %v1929 = vsub.f32 %v1919, %v1927
    %v1930 = vmul.f32 %v1928, %v1928
    %v1931 = vmul.f32 %v1929, %v1929
    %v1932 = vsel %vm137, %v1930, 0.0
    %1933 = vadd.xlane.f32.xlu0 %v1932
    %v1934 = vpop.xlane.xlu0 %1933
    %v1935 = vsel %vm137, %v1931, 0.0
    %1936 = vadd.xlane.f32.xlu0 %v1935
    %v1937 = vpop.xlane.xlu0 %1936
    %v1938 = vmul.f32 %v1934, %v796
    %v1939 = vmul.f32 %v1937, %v796
    %v1940 = vadd.f32 %v1938, 1e-12
    %v1941 = vadd.f32 %v1939, 1e-12
    %v1942 = vrsqrt.pop %v1940
    %v1943 = vmul.f32 %v1942, %v1940
    %v1944 = vmul.f32 %v1943, %v1942
    %v1945 = vmul.f32 0.5, %v1944
    %v1946 = vsub.f32 1.5, %v1945
    %v1947 = vmul.f32 %v1942, %v1946
    %vm1948 = vweird.f32 %v1940
    %vm1949 = vweird.f32 %v1942
    %vm1950 = vmor %vm1948, %vm1949
    %v1951 = vsel %vm1950, %v1942, %v1947
    %v1952 = vrsqrt.pop %v1941
    %v1953 = vmul.f32 %v1952, %v1941
    %v1954 = vmul.f32 %v1953, %v1952
    %v1955 = vmul.f32 0.5, %v1954
    %v1956 = vsub.f32 1.5, %v1955
    %v1957 = vmul.f32 %v1952, %v1956
    %vm1958 = vweird.f32 %v1941
    %vm1959 = vweird.f32 %v1952
    %vm1960 = vmor %vm1958, %vm1959
    %v1961 = vsel %vm1960, %v1952, %v1957
    %v1962 = vmul.f32 %v1928, %v1951
    %v1963 = vmul.f32 %v1929, %v1961
    %v1964 = vperm.slane %v1059, 6
    %v1965 = vmul.f32 %v1962, %v1964
    %v1966 = vmul.f32 %v1963, %v1964
    %v1967 = vperm.slane %v1059, 7
    %v1968 = vadd.f32 %v1965, %v1967
    %v1969 = vadd.f32 %v1966, %v1967
    %1970 = vst.msk [vmem:[#allocation11] sm:$0xff] %vm137, %v1968
    %1971 = vst.msk [vmem:[#allocation11 + $0x8] sm:$0xff] %vm137, %v1969
    // Predicated region
    $region42: #{tpu_custom_call.1} parent=1 // pred_check
      _
    $region43: #{tpu_custom_call.1} parent=1 // pred_check_branch
      %1973 = sbr.rel (0) target = $region45
    $region44: #{tpu_custom_call.1} parent=1 // pred_region
      %1975 = vsyncadd [#allocation4], 0
      %s1976 = sshll.u32 [#allocation11], 4
      %s1977 = int_to_ptr.vmem [resolvable:$true] %s1976
      %s1978 = sshll.u32 %s5, 4
      %s1979 = int_to_ptr.hbm [resolvable:$true] %s1978
      %1984 = dma.vmem_to_hbm [thread:$0]  %s1977, 256, %s1979, [#allocation4], 128, 128, 8
    $region45: #{tpu_custom_call.1} parent=1 // pred_fallthru
      _
    // Predicated region
    $region46: #{tpu_custom_call.1} parent=1 // pred_check
      _
    $region47: #{tpu_custom_call.1} parent=1 // pred_check_branch
      %1986 = sbr.rel (0) target = $region49
    $region48: #{tpu_custom_call.1} parent=1 // pred_region
      %1988 = dma.done [#allocation4], 256
    $region49: #{tpu_custom_call.1} parent=1 // pred_fallthru
      _
    %1989 = vsyncpa [#allocation3], 1
    %1990 = vsyncpa [#allocation6], 1
    %1991 = vsyncpa [#allocation9], 1
    %1992 = vsyncpa [#allocation4], 1

</llo_original>
